<compile_context>
chip_gen: v5e
topology: v5e:2x2
jax: 0.10.0
libtpu: 0.0.40
codegen_flags: <defaults>
</compile_context>

<pallas_src>
import functools

import jax
import jax.numpy as jnp
from jax.experimental import pallas as pl
from jax.experimental.pallas import tpu as pltpu

NUM_FTRS = 512   # e.g. resnet18 fc.in_features
H1 = 256
H2 = 64
H2_PAD = 128     # fc2 output padded to a full 128-lane vreg width


def regressor_kernel(x_ref, w1_ref, b1_ref, w2_ref, b2_ref, w3_ref, b3_ref, o_ref):
    """Fused MLP forward: relu(x@W1+b1) -> relu(.@W2+b2) -> <.,w3> + b3."""
    x = x_ref[...]                                   # (TILE_B, NUM_FTRS) bf16

    # fc1 + ReLU  (bf16 x bf16 -> f32 accumulate on the MXU)
    h1 = jnp.dot(x, w1_ref[...], preferred_element_type=jnp.float32) + b1_ref[...]
    h1 = jnp.maximum(h1, 0.0)
    # TODO(synk): training-mode dropout (p=0.5) omitted; eval-mode forward (identity).

    # fc2 + ReLU (output padded 64 -> 128 lanes; padded lanes are exactly 0)
    h2 = jnp.dot(h1.astype(jnp.bfloat16), w2_ref[...],
                 preferred_element_type=jnp.float32) + b2_ref[...]
    h2 = jnp.maximum(h2, 0.0)                        # (TILE_B, 128) f32

    # fc3: N=1, so skip the MXU — VPU multiply + XLU lane reduction.
    # w3_ref is (1, 128) f32 with zeros in the padded lanes, b3 scalar in SMEM.
    out = jnp.sum(h2 * w3_ref[...], axis=-1, keepdims=True) + b3_ref[0, 0]
    o_ref[...] = out.astype(o_ref.dtype)             # (TILE_B, 1)


def prepare_params(w1, b1, w2, b2, w3, b3):
    """Cast matmul weights to bf16, pad fc2/fc3 to 128 lanes, scalarize b3."""
    w1b = w1.astype(jnp.bfloat16)                                        # (F, 256)  bf16
    w2p = jnp.pad(w2, ((0, 0), (0, H2_PAD - H2))).astype(jnp.bfloat16)   # (256, 128) bf16
    b2p = jnp.pad(b2, ((0, 0), (0, H2_PAD - H2)))                        # (1, 128)  f32
    w3p = jnp.pad(w3.reshape(1, H2), ((0, 0), (0, H2_PAD - H2)))         # (1, 128)  f32
    b3s = b3.reshape(1, 1).astype(jnp.float32)                           # (1, 1)    f32 (SMEM)
    return w1b, b1, w2p, b2p, w3p, b3s


def regressor_forward(x, prepared_params, *, tile_b=512):
    """x: (B, NUM_FTRS) f32.  Returns (B, 1) f32 (eval-mode forward)."""
    w1, b1, w2, b2, w3, b3 = prepared_params
    B, F = x.shape

    # Clamp tile to the (8-rounded) batch so small batches don't pad to a huge
    # tile, and keep it a multiple of 8 (sublane granularity).
    b_round8 = ((B + 7) // 8) * 8
    tile_b = max(8, min(((tile_b + 7) // 8) * 8, b_round8))

    num_tiles = pl.cdiv(B, tile_b)
    b_pad = num_tiles * tile_b

    xb = x.astype(jnp.bfloat16)
    if b_pad != B:
        xb = jnp.pad(xb, ((0, b_pad - B), (0, 0)))

    flops = 2 * b_pad * (F * H1 + H1 * H2_PAD + H2_PAD)
    bytes_accessed = (xb.size * 2 + w1.size * 2 + w2.size * 2
                      + (b1.size + b2.size + b3.size + w3.size) * 4 + b_pad * 4)

    out = pl.pallas_call(
        regressor_kernel,
        out_shape=jax.ShapeDtypeStruct((b_pad, 1), jnp.float32),
        grid=(num_tiles,),
        in_specs=[
            # Activations: tiled over batch -> pipelined HBM loads.
            pl.BlockSpec((tile_b, F), lambda i: (i, 0)),
            # Weights/biases: constant block index -> VMEM-resident across steps.
            pl.BlockSpec(w1.shape, lambda i: (0, 0)),
            pl.BlockSpec(b1.shape, lambda i: (0, 0)),
            pl.BlockSpec(w2.shape, lambda i: (0, 0)),
            pl.BlockSpec(b2.shape, lambda i: (0, 0)),
            pl.BlockSpec(w3.shape, lambda i: (0, 0)),
            # Scalar fc3 bias lives in SMEM.
            pl.BlockSpec((1, 1), lambda i: (0, 0), memory_space=pltpu.SMEM),
        ],
        out_specs=pl.BlockSpec((tile_b, 1), lambda i: (i, 0)),
        compiler_params=pltpu.CompilerParams(
            dimension_semantics=("parallel",)),
        cost_estimate=pl.CostEstimate(flops=flops, transcendentals=0,
                                      bytes_accessed=bytes_accessed),
    )(xb, w1, b1, w2, b2, w3, b3)

    return out[:B]


def init_linear(key, fan_in, fan_out):
    """Deterministic init mimicking PyTorch nn.Linear default U(-1/sqrt(in), 1/sqrt(in))."""
    kw, kb = jax.random.split(key)
    bound = 1.0 / jnp.sqrt(jnp.float32(fan_in))
    w = jax.random.uniform(kw, (fan_in, fan_out), jnp.float32, -bound, bound)  # (in, out)
    b = jax.random.uniform(kb, (1, fan_out), jnp.float32, -bound, bound)
    return w, b


def reference_forward(x, prepared_params):
    """Pure-JAX reference using the same bf16-rounded weights/activations."""
    w1, b1, w2, b2, w3, b3 = prepared_params
    xb = x.astype(jnp.bfloat16)
    h1 = jnp.maximum(jnp.dot(xb, w1, preferred_element_type=jnp.float32) + b1, 0.0)
    h2 = jnp.maximum(
        jnp.dot(h1.astype(jnp.bfloat16), w2, preferred_element_type=jnp.float32) + b2, 0.0)
    return jnp.sum(h2 * w3, axis=-1, keepdims=True) + b3[0, 0]


if __name__ == "__main__":
    BATCH = 512       # batched so the MXU / DMA pipeline are actually exercised
    TILE_B = 128      # 4 grid steps -> pipelined loads, megacore-parallel on v7x

    key = jax.random.PRNGKey(0)
    kx, k1, k2, k3 = jax.random.split(key, 4)

    x = jax.random.normal(kx, (BATCH, NUM_FTRS), jnp.float32)
    w1, b1 = init_linear(k1, NUM_FTRS, H1)
    w2, b2 = init_linear(k2, H1, H2)
    w3, b3 = init_linear(k3, H2, 1)
    params = prepare_params(w1, b1, w2, b2, w3, b3)

    fwd = jax.jit(functools.partial(regressor_forward, tile_b=TILE_B))
    out = fwd(x, params)
    out = jax.block_until_ready(out)

    ref = reference_forward(x, params)
    assert out.shape == (BATCH, 1), out.shape
    assert jnp.allclose(out, ref, atol=2e-3, rtol=2e-3), "mismatch vs reference"

    print("KERNEL_OK")
</pallas_src>

<mosaic_0001>
module attributes {stable_mosaic.version = 11 : i64} {
  func.func @regressor_kernel(%arg0: i32, %arg1: memref<128x512xbf16, #tpu.memory_space<vmem>>, %arg2: memref<512x256xbf16, #tpu.memory_space<vmem>>, %arg3: memref<1x256xf32, #tpu.memory_space<vmem>>, %arg4: memref<256x128xbf16, #tpu.memory_space<vmem>>, %arg5: memref<1x128xf32, #tpu.memory_space<vmem>>, %arg6: memref<1x128xf32, #tpu.memory_space<vmem>>, %arg7: memref<1x1xf32, #tpu.memory_space<smem>>, %arg8: memref<128x1xf32, #tpu.memory_space<vmem>>) attributes {dimension_semantics = [#tpu.dimension_semantics<parallel>], iteration_bounds = array<i64: 4>, scalar_prefetch = 0 : i64, scratch_operands = 0 : i64, tpu.core_type = #tpu.core_type<tc>, window_params = [{transform_indices = @transform_0, window_bounds = array<i64: 128, 512>}, {pipeline_mode = #tpu.pipeline_mode<synchronous>, transform_indices = @transform_1, window_bounds = array<i64: 512, 256>}, {pipeline_mode = #tpu.pipeline_mode<synchronous>, transform_indices = @transform_2, window_bounds = array<i64: 1, 256>}, {pipeline_mode = #tpu.pipeline_mode<synchronous>, transform_indices = @transform_3, window_bounds = array<i64: 256, 128>}, {pipeline_mode = #tpu.pipeline_mode<synchronous>, transform_indices = @transform_4, window_bounds = array<i64: 1, 128>}, {pipeline_mode = #tpu.pipeline_mode<synchronous>, transform_indices = @transform_5, window_bounds = array<i64: 1, 128>}, {transform_indices = @transform_6, window_bounds = array<i64: 1, 1>}, {transform_indices = @transform_7, window_bounds = array<i64: 128, 1>}]} {
    %c0 = arith.constant 0 : index
    %c0_0 = arith.constant 0 : index
    %0 = vector.load %arg1[%c0, %c0_0] : memref<128x512xbf16, #tpu.memory_space<vmem>>, vector<128x512xbf16>
    %c0_1 = arith.constant 0 : index
    %c0_2 = arith.constant 0 : index
    %1 = vector.load %arg2[%c0_1, %c0_2] : memref<512x256xbf16, #tpu.memory_space<vmem>>, vector<512x256xbf16>
    %cst = arith.constant dense<0.000000e+00> : vector<128x256xf32>
    %2 = tpu.matmul %0, %1, %cst {dimension_numbers = #tpu.dot_dimension_numbers<[1], [0], [0], [1], [0, 0, 1, 1], [], []>} : vector<128x512xbf16>, vector<512x256xbf16>, vector<128x256xf32> -> vector<128x256xf32>
    %c0_3 = arith.constant 0 : index
    %c0_4 = arith.constant 0 : index
    %3 = vector.load %arg3[%c0_3, %c0_4] : memref<1x256xf32, #tpu.memory_space<vmem>>, vector<1x256xf32>
    %4 = vector.broadcast %3 : vector<1x256xf32> to vector<128x256xf32>
    %5 = arith.addf %2, %4 : vector<128x256xf32>
    %cst_5 = arith.constant 0.000000e+00 : f32
    %6 = vector.broadcast %cst_5 : f32 to vector<128x256xf32>
    %7 = arith.maximumf %5, %6 : vector<128x256xf32>
    %8 = arith.truncf %7 : vector<128x256xf32> to vector<128x256xbf16>
    %c0_6 = arith.constant 0 : index
    %c0_7 = arith.constant 0 : index
    %9 = vector.load %arg4[%c0_6, %c0_7] : memref<256x128xbf16, #tpu.memory_space<vmem>>, vector<256x128xbf16>
    %cst_8 = arith.constant dense<0.000000e+00> : vector<128x128xf32>
    %10 = tpu.matmul %8, %9, %cst_8 {dimension_numbers = #tpu.dot_dimension_numbers<[1], [0], [0], [1], [0, 0, 1, 1], [], []>} : vector<128x256xbf16>, vector<256x128xbf16>, vector<128x128xf32> -> vector<128x128xf32>
    %c0_9 = arith.constant 0 : index
    %c0_10 = arith.constant 0 : index
    %11 = vector.load %arg5[%c0_9, %c0_10] : memref<1x128xf32, #tpu.memory_space<vmem>>, vector<1x128xf32>
    %12 = vector.broadcast %11 : vector<1x128xf32> to vector<128x128xf32>
    %13 = arith.addf %10, %12 : vector<128x128xf32>
    %cst_11 = arith.constant 0.000000e+00 : f32
    %14 = vector.broadcast %cst_11 : f32 to vector<128x128xf32>
    %15 = arith.maximumf %13, %14 : vector<128x128xf32>
    %c0_12 = arith.constant 0 : index
    %c0_13 = arith.constant 0 : index
    %16 = vector.load %arg6[%c0_12, %c0_13] : memref<1x128xf32, #tpu.memory_space<vmem>>, vector<1x128xf32>
    %17 = vector.broadcast %16 : vector<1x128xf32> to vector<128x128xf32>
    %18 = arith.mulf %15, %17 : vector<128x128xf32>
    %cst_14 = arith.constant dense<0.000000e+00> : vector<128xf32>
    %19 = vector.multi_reduction <add>, %18, %cst_14 [1] : vector<128x128xf32> to vector<128xf32>
    %20 = vector.shape_cast %19 : vector<128xf32> to vector<128x1xf32>
    %c0_15 = arith.constant 0 : index
    %c0_16 = arith.constant 0 : index
    %21 = memref.load %arg7[%c0_15, %c0_16] : memref<1x1xf32, #tpu.memory_space<smem>>
    %22 = vector.broadcast %21 : f32 to vector<128x1xf32>
    %23 = arith.addf %20, %22 : vector<128x1xf32>
    %c0_17 = arith.constant 0 : index
    %c0_18 = arith.constant 0 : index
    %24 = vector.load %arg8[%c0_17, %c0_18] : memref<128x1xf32, #tpu.memory_space<vmem>>, vector<128x1xf32>
    tpu.vector_store %arg8[%c0_17, %c0_18], %23 {strides = array<i32>} : memref<128x1xf32, #tpu.memory_space<vmem>>, vector<128x1xf32>,
    return
  }
  func.func @transform_0(%arg0: i32) -> (i32, i32) {
    %c0_i32 = arith.constant 0 : i32
    %c0_i32_0 = arith.constant 0 : i32
    return %arg0, %c0_i32 : i32, i32
  }
  func.func @transform_1(%arg0: i32) -> (i32, i32) {
    %c0_i32 = arith.constant 0 : i32
    %c0_i32_0 = arith.constant 0 : i32
    %c0_i32_1 = arith.constant 0 : i32
    return %c0_i32, %c0_i32_0 : i32, i32
  }
  func.func @transform_2(%arg0: i32) -> (i32, i32) {
    %c0_i32 = arith.constant 0 : i32
    %c0_i32_0 = arith.constant 0 : i32
    %c0_i32_1 = arith.constant 0 : i32
    return %c0_i32, %c0_i32_0 : i32, i32
  }
  func.func @transform_3(%arg0: i32) -> (i32, i32) {
    %c0_i32 = arith.constant 0 : i32
    %c0_i32_0 = arith.constant 0 : i32
    %c0_i32_1 = arith.constant 0 : i32
    return %c0_i32, %c0_i32_0 : i32, i32
  }
  func.func @transform_4(%arg0: i32) -> (i32, i32) {
    %c0_i32 = arith.constant 0 : i32
    %c0_i32_0 = arith.constant 0 : i32
    %c0_i32_1 = arith.constant 0 : i32
    return %c0_i32, %c0_i32_0 : i32, i32
  }
  func.func @transform_5(%arg0: i32) -> (i32, i32) {
    %c0_i32 = arith.constant 0 : i32
    %c0_i32_0 = arith.constant 0 : i32
    %c0_i32_1 = arith.constant 0 : i32
    return %c0_i32, %c0_i32_0 : i32, i32
  }
  func.func @transform_6(%arg0: i32) -> (i32, i32) {
    %c0_i32 = arith.constant 0 : i32
    %c0_i32_0 = arith.constant 0 : i32
    %c0_i32_1 = arith.constant 0 : i32
    return %c0_i32, %c0_i32_0 : i32, i32
  }
  func.func @transform_7(%arg0: i32) -> (i32, i32) {
    %c0_i32 = arith.constant 0 : i32
    %c0_i32_0 = arith.constant 0 : i32
    return %arg0, %c0_i32 : i32, i32
  }
}

</mosaic_0001>

<llo_original>
// kernel: regressor_forward.1
$region0: #{regressor_forward.1}
  #allocation0 [shape = 'u32[]', space=smem, size = 0x4, offset = 0x4, fixed_abs, tag = 'smem constant byte address 0x4 - core index']
  #allocation1 [shape = 'u32[72,128]{1,0:T(1,128)}', space=vmem, size = 0x9000, scoped, tag = 'internal scratch']
  #allocation2 [shape = 'f32[1,1]{1,0:T(1,128)S(6)}', space=smem, size = 0x200, scoped, tag = 'scoped memory for regressor_forward.1']
  %s0 = inlined_call_operand.vmem [shape: bf16[512,512], index: 0, kind: input, shape index: {}]
  %s1 = inlined_call_operand.vmem [shape: bf16[512,256], index: 1, kind: input, shape index: {}]
  %s2 = inlined_call_operand.vmem [shape: f32[1,256], index: 2, kind: input, shape index: {}]
  %s3 = inlined_call_operand.vmem [shape: bf16[256,128], index: 3, kind: input, shape index: {}]
  %s4 = inlined_call_operand.vmem [shape: f32[1,128], index: 4, kind: input, shape index: {}]
  %s5 = inlined_call_operand.vmem [shape: f32[1,128], index: 5, kind: input, shape index: {}]
  %s6 = inlined_call_operand.<no memory space> [shape: f32[1,1], index: 6, kind: input, shape index: {}]
  %s7 = inlined_call_operand.vmem [shape: f32[512,1], index: 7, kind: output, shape index: {}]
  %s8 = sld [smem:[#allocation0]]
  $region61: #{regressor_forward.1} parent=0
    _
  %s10 = ssub.s32 1, %s8
  %s11 = scalar_select 0, %s10, %s8
  %12 = sst [smem:[#allocation2]] %s6
  loop: start=0, step=1, limit=6
  $region2: #{regressor_forward.1} parent=0 // loop_pre_header
    _
  $region3: #{regressor_forward.1} parent=0 // loop_header
    %s14 = sphi 0, %s18
    %p15 = scmp.ge.s32.totalorder %s14, 6
    %s24 = sphi 0, %s26
    %s27 = sphi 0, %s24
    %s28 = sphi 0, %s27
    %s44 = sphi 0, %s28
    %s48 = sphi 0, %s48
    %s50 = sphi 0, %s48
    %s51 = sphi 0, %s50
    %s65 = sphi 0, %s51
    %s69 = sphi 0, %s69
    %s71 = sphi 0, %s69
    %s72 = sphi 0, %s71
    %s86 = sphi 0, %s72
    %s90 = sphi 0, %s90
    %s92 = sphi 0, %s90
    %s93 = sphi 0, %s92
    %s107 = sphi 0, %s93
    %s111 = sphi 0, %s111
    %s113 = sphi 0, %s111
    %s114 = sphi 0, %s113
    %s128 = sphi 0, %s114
    %s132 = sphi 0, %s132
    %s134 = sphi 0, %s132
    %s135 = sphi 0, %s134
    %s149 = sphi 0, %s135
    %s153 = sphi 0, %s153
    %s155 = sphi 0, %s153
    %s156 = sphi 0, %s155
    %s170 = sphi 0, %s156
    %s176 = sphi 0, %s178
    %s179 = sphi 0, %s176
    %s180 = sphi 0, %s179
    %s196 = sphi 0, %s180
  $region4: #{regressor_forward.1} parent=0 // loop_header_branch
    %17 = sbr.rel (%p15) target = $region8
  $region5: #{regressor_forward.1} parent=0 // loop_body
    %s19 = ssub.s32 %s14, 1
    %s20 = ssub.s32 %s14, 2
    %s21 = sadd.s32 %s14, 1
    %s22 = ssub.s32 %s14, %s21
    %p23 = scmp.eq.s32.totalorder %s22, 0
    %s25 = sadd.s32 %s24, 1
    %s26 = scalar_select %p23, %s24, %s25
    %p29 = pneg %p23
    %p30 = scmp.eq.s32.totalorder %s14, 3
    %p31 = por %p29, %p30
    %p32 = scmp.ne.s32.totalorder %s24, %s27
    %p33 = scmp.eq.s32.totalorder %s14, 0
    %p34 = por %p32, %p33
    %p35 = scmp.ne.s32.totalorder %s24, %s27
    %p36 = scmp.eq.s32.totalorder %s19, 3
    %p37 = por %p35, %p36
    %p38 = scmp.ne.s32.totalorder %s27, %s28
    %p39 = scmp.eq.s32.totalorder %s19, 0
    %p40 = por %p38, %p39
    %p41 = scmp.ne.s32.totalorder %s27, %s28
    %p42 = scmp.eq.s32.totalorder %s20, 3
    %p43 = por %p41, %p42
    %p45 = scmp.ne.s32.totalorder %s28, %s44
    %p46 = scmp.eq.s32.totalorder %s20, 0
    %p47 = por %p45, %p46
    %s49 = sadd.s32 %s48, 1
    %p52 = scmp.eq.s32.totalorder %s14, 3
    %p53 = scmp.ne.s32.totalorder %s48, %s50
    %p54 = scmp.eq.s32.totalorder %s14, 0
    %p55 = por %p53, %p54
    %p56 = scmp.ne.s32.totalorder %s48, %s50
    %p57 = scmp.eq.s32.totalorder %s19, 3
    %p58 = por %p56, %p57
    %p59 = scmp.ne.s32.totalorder %s50, %s51
    %p60 = scmp.eq.s32.totalorder %s19, 0
    %p61 = por %p59, %p60
    %p62 = scmp.ne.s32.totalorder %s50, %s51
    %p63 = scmp.eq.s32.totalorder %s20, 3
    %p64 = por %p62, %p63
    %p66 = scmp.ne.s32.totalorder %s51, %s65
    %p67 = scmp.eq.s32.totalorder %s20, 0
    %p68 = por %p66, %p67
    %s70 = sadd.s32 %s69, 1
    %p73 = scmp.eq.s32.totalorder %s14, 3
    %p74 = scmp.ne.s32.totalorder %s69, %s71
    %p75 = scmp.eq.s32.totalorder %s14, 0
    %p76 = por %p74, %p75
    %p77 = scmp.ne.s32.totalorder %s69, %s71
    %p78 = scmp.eq.s32.totalorder %s19, 3
    %p79 = por %p77, %p78
    %p80 = scmp.ne.s32.totalorder %s71, %s72
    %p81 = scmp.eq.s32.totalorder %s19, 0
    %p82 = por %p80, %p81
    %p83 = scmp.ne.s32.totalorder %s71, %s72
    %p84 = scmp.eq.s32.totalorder %s20, 3
    %p85 = por %p83, %p84
    %p87 = scmp.ne.s32.totalorder %s72, %s86
    %p88 = scmp.eq.s32.totalorder %s20, 0
    %p89 = por %p87, %p88
    %s91 = sadd.s32 %s90, 1
    %p94 = scmp.eq.s32.totalorder %s14, 3
    %p95 = scmp.ne.s32.totalorder %s90, %s92
    %p96 = scmp.eq.s32.totalorder %s14, 0
    %p97 = por %p95, %p96
    %p98 = scmp.ne.s32.totalorder %s90, %s92
    %p99 = scmp.eq.s32.totalorder %s19, 3
    %p100 = por %p98, %p99
    %p101 = scmp.ne.s32.totalorder %s92, %s93
    %p102 = scmp.eq.s32.totalorder %s19, 0
    %p103 = por %p101, %p102
    %p104 = scmp.ne.s32.totalorder %s92, %s93
    %p105 = scmp.eq.s32.totalorder %s20, 3
    %p106 = por %p104, %p105
    %p108 = scmp.ne.s32.totalorder %s93, %s107
    %p109 = scmp.eq.s32.totalorder %s20, 0
    %p110 = por %p108, %p109
    %s112 = sadd.s32 %s111, 1
    %p115 = scmp.eq.s32.totalorder %s14, 3
    %p116 = scmp.ne.s32.totalorder %s111, %s113
    %p117 = scmp.eq.s32.totalorder %s14, 0
    %p118 = por %p116, %p117
    %p119 = scmp.ne.s32.totalorder %s111, %s113
    %p120 = scmp.eq.s32.totalorder %s19, 3
    %p121 = por %p119, %p120
    %p122 = scmp.ne.s32.totalorder %s113, %s114
    %p123 = scmp.eq.s32.totalorder %s19, 0
    %p124 = por %p122, %p123
    %p125 = scmp.ne.s32.totalorder %s113, %s114
    %p126 = scmp.eq.s32.totalorder %s20, 3
    %p127 = por %p125, %p126
    %p129 = scmp.ne.s32.totalorder %s114, %s128
    %p130 = scmp.eq.s32.totalorder %s20, 0
    %p131 = por %p129, %p130
    %s133 = sadd.s32 %s132, 1
    %p136 = scmp.eq.s32.totalorder %s14, 3
    %p137 = scmp.ne.s32.totalorder %s132, %s134
    %p138 = scmp.eq.s32.totalorder %s14, 0
    %p139 = por %p137, %p138
    %p140 = scmp.ne.s32.totalorder %s132, %s134
    %p141 = scmp.eq.s32.totalorder %s19, 3
    %p142 = por %p140, %p141
    %p143 = scmp.ne.s32.totalorder %s134, %s135
    %p144 = scmp.eq.s32.totalorder %s19, 0
    %p145 = por %p143, %p144
    %p146 = scmp.ne.s32.totalorder %s134, %s135
    %p147 = scmp.eq.s32.totalorder %s20, 3
    %p148 = por %p146, %p147
    %p150 = scmp.ne.s32.totalorder %s135, %s149
    %p151 = scmp.eq.s32.totalorder %s20, 0
    %p152 = por %p150, %p151
    %s154 = sadd.s32 %s153, 1
    %p157 = scmp.eq.s32.totalorder %s14, 3
    %p158 = scmp.ne.s32.totalorder %s153, %s155
    %p159 = scmp.eq.s32.totalorder %s14, 0
    %p160 = por %p158, %p159
    %p161 = scmp.ne.s32.totalorder %s153, %s155
    %p162 = scmp.eq.s32.totalorder %s19, 3
    %p163 = por %p161, %p162
    %p164 = scmp.ne.s32.totalorder %s155, %s156
    %p165 = scmp.eq.s32.totalorder %s19, 0
    %p166 = por %p164, %p165
    %p167 = scmp.ne.s32.totalorder %s155, %s156
    %p168 = scmp.eq.s32.totalorder %s20, 3
    %p169 = por %p167, %p168
    %p171 = scmp.ne.s32.totalorder %s156, %s170
    %p172 = scmp.eq.s32.totalorder %s20, 0
    %p173 = por %p171, %p172
    %s174 = ssub.s32 %s14, %s21
    %p175 = scmp.eq.s32.totalorder %s174, 0
    %s177 = sadd.s32 %s176, 1
    %s178 = scalar_select %p175, %s176, %s177
    %p181 = pneg %p175
    %p182 = scmp.eq.s32.totalorder %s14, 3
    %p183 = por %p181, %p182
    %p184 = scmp.ne.s32.totalorder %s176, %s179
    %p185 = scmp.eq.s32.totalorder %s14, 0
    %p186 = por %p184, %p185
    %p187 = scmp.ne.s32.totalorder %s176, %s179
    %p188 = scmp.eq.s32.totalorder %s19, 3
    %p189 = por %p187, %p188
    %p190 = scmp.ne.s32.totalorder %s179, %s180
    %p191 = scmp.eq.s32.totalorder %s19, 0
    %p192 = por %p190, %p191
    %p193 = scmp.ne.s32.totalorder %s179, %s180
    %p194 = scmp.eq.s32.totalorder %s20, 3
    %p195 = por %p193, %p194
    %p197 = scmp.ne.s32.totalorder %s180, %s196
    %p198 = scmp.eq.s32.totalorder %s20, 0
    %p199 = por %p197, %p198
    %p200 = scmp.le.s32.totalorder 1, %s14
    %p201 = scmp.lt.s32.totalorder %s14, 5
    %p202 = pnand %p200, %p201
    %p203 = pneg %p202
    // Predicated region
    $region9: #{regressor_forward.1} parent=5 // pred_check
      _
    $region10: #{regressor_forward.1} parent=5 // pred_check_branch
      %205 = sbr.rel (%p202) target = $region12
    $region11: #{regressor_forward.1} parent=5 // pred_region
      %s206 = ssub.s32 %s14, 1
      // Predicated region
      $region13: #{regressor_forward.1} parent=11 // pred_check
        %p207 = pneg %p61
      $region14: #{regressor_forward.1} parent=11 // pred_check_branch
        %209 = sbr.rel (%p207) target = $region16
      $region15: #{regressor_forward.1} parent=11 // pred_region
        _
      $region16: #{regressor_forward.1} parent=11 // pred_fallthru
        _
      // Predicated region
      $region17: #{regressor_forward.1} parent=11 // pred_check
        %p210 = pneg %p82
      $region18: #{regressor_forward.1} parent=11 // pred_check_branch
        %212 = sbr.rel (%p210) target = $region20
      $region19: #{regressor_forward.1} parent=11 // pred_region
        _
      $region20: #{regressor_forward.1} parent=11 // pred_fallthru
        _
      // Predicated region
      $region21: #{regressor_forward.1} parent=11 // pred_check
        %p213 = pneg %p103
      $region22: #{regressor_forward.1} parent=11 // pred_check_branch
        %215 = sbr.rel (%p213) target = $region24
      $region23: #{regressor_forward.1} parent=11 // pred_region
        _
      $region24: #{regressor_forward.1} parent=11 // pred_fallthru
        _
      // Predicated region
      $region25: #{regressor_forward.1} parent=11 // pred_check
        %p216 = pneg %p124
      $region26: #{regressor_forward.1} parent=11 // pred_check_branch
        %218 = sbr.rel (%p216) target = $region28
      $region27: #{regressor_forward.1} parent=11 // pred_region
        _
      $region28: #{regressor_forward.1} parent=11 // pred_fallthru
        _
      // Predicated region
      $region29: #{regressor_forward.1} parent=11 // pred_check
        %p219 = pneg %p145
      $region30: #{regressor_forward.1} parent=11 // pred_check_branch
        %221 = sbr.rel (%p219) target = $region32
      $region31: #{regressor_forward.1} parent=11 // pred_region
        _
      $region32: #{regressor_forward.1} parent=11 // pred_fallthru
        _
      // Predicated region
      $region33: #{regressor_forward.1} parent=11 // pred_check
        %p222 = pneg %p166
      $region34: #{regressor_forward.1} parent=11 // pred_check_branch
        %224 = sbr.rel (%p222) target = $region36
      $region35: #{regressor_forward.1} parent=11 // pred_region
        _
      $region36: #{regressor_forward.1} parent=11 // pred_fallthru
        _
    $region12: #{regressor_forward.1} parent=5 // pred_fallthru
      _
    %p225 = scmp.lt.s32.totalorder %s14, 4
    // Predicated region
    $region37: #{regressor_forward.1} parent=5 // pred_check
      %p226 = pneg %p225
    $region38: #{regressor_forward.1} parent=5 // pred_check_branch
      %228 = sbr.rel (%p226) target = $region40
    $region39: #{regressor_forward.1} parent=5 // pred_region
      // Predicated region
      $region41: #{regressor_forward.1} parent=39 // pred_check
        %p229 = pneg %p34
      $region42: #{regressor_forward.1} parent=39 // pred_check_branch
        %231 = sbr.rel (%p229) target = $region44
      $region43: #{regressor_forward.1} parent=39 // pred_region
        %s232 = smul.u32 16, %s14
        %p233 = scmp.lt.s32.totalorder %s232, 63
        %s234 = scalar_select %p233, %s232, 63
        %s235 = smul.addr %s234, 4
        %s236 = smul.addr %s235, 4
        %s237 = scalar_lea.vmem %s0, %s236
        %s238 = smul.u32 16, %s14
      $region44: #{regressor_forward.1} parent=39 // pred_fallthru
        _
    $region40: #{regressor_forward.1} parent=5 // pred_fallthru
      _
    %p239 = scmp.le.s32.totalorder 1, %s14
    %p240 = scmp.lt.s32.totalorder %s14, 5
    %p241 = pnand %p239, %p240
    %p242 = pneg %p241
    // Predicated region
    $region45: #{regressor_forward.1} parent=5 // pred_check
      _
    $region46: #{regressor_forward.1} parent=5 // pred_check_branch
      %244 = sbr.rel (%p241) target = $region48
    $region47: #{regressor_forward.1} parent=5 // pred_region
      %s245 = ssub.s32 %s14, 1
      %s246 = smul.u32 16, %s19
      %p247 = scmp.lt.s32.totalorder %s246, 63
      %s248 = scalar_select %p247, %s246, 63
      %s249 = smul.addr %s248, 4
      %s250 = smul.addr %s249, 4
      %s251 = scalar_lea.vmem %s0, %s250
      %p252 = pneg %p40
      %p253 = pneg %p37
      %p254 = pneg %p61
      %p255 = pneg %p58
      %p256 = pneg %p82
      %p257 = pneg %p79
      %p258 = pneg %p103
      %p259 = pneg %p100
      %p260 = pneg %p124
      %p261 = pneg %p121
      %p262 = pneg %p145
      %p263 = pneg %p142
      %p264 = pneg %p166
      %p265 = pneg %p163
      %p266 = pneg %p192
      %p267 = pneg %p189
      %s268 = smul.u32 16, %s19
      %p269 = scmp.lt.s32.totalorder %s268, 63
      %s270 = scalar_select %p269, %s268, 63
      %s271 = smul.addr %s270, 8
      %s272 = scalar_lea.vmem %s7, %s271
      %s273 = smul.u32 16, %s19
      %p274 = scmp.lt.s32.totalorder %s273, 63
      %s275 = scalar_select %p274, %s273, 63
      %s276 = smul.addr %s275, 4
      %s277 = smul.addr %s276, 4
      %s278 = scalar_lea.vmem %s0, %s277
      %s279 = smul.u32 16, %s19
      %s280 = smul.u32 16, %s19
      %p281 = scmp.lt.s32.totalorder %s280, 63
      %s282 = scalar_select %p281, %s280, 63
      %s283 = smul.addr %s282, 8
      %s284 = scalar_lea.vmem %s7, %s283
      %s285 = smul.u32 16, %s19
      %v286 = vld [vmem:[%s278] sm:$0xff]
      %v287 = vld [vmem:[%s278 + $0x8] sm:$0xff]
      %v288 = vld [vmem:[%s278 + $0x10] sm:$0xff]
      %v289 = vld [vmem:[%s278 + $0x18] sm:$0xff]
      %v290 = vld [vmem:[%s278 + $0x20] sm:$0xff]
      %v291 = vld [vmem:[%s278 + $0x28] sm:$0xff]
      %v292 = vld [vmem:[%s278 + $0x30] sm:$0xff]
      %v293 = vld [vmem:[%s278 + $0x38] sm:$0xff]
      %v294 = vld [vmem:[%s278 + $0x40] sm:$0xff]
      %v295 = vld [vmem:[%s278 + $0x48] sm:$0xff]
      %v296 = vld [vmem:[%s278 + $0x50] sm:$0xff]
      %v297 = vld [vmem:[%s278 + $0x58] sm:$0xff]
      %v298 = vld [vmem:[%s278 + $0x60] sm:$0xff]
      %v299 = vld [vmem:[%s278 + $0x68] sm:$0xff]
      %v300 = vld [vmem:[%s278 + $0x70] sm:$0xff]
      %v301 = vld [vmem:[%s278 + $0x78] sm:$0xff]
      %v302 = vld [vmem:[%s278 + $0x80] sm:$0xff]
      %v303 = vld [vmem:[%s278 + $0x88] sm:$0xff]
      %v304 = vld [vmem:[%s278 + $0x90] sm:$0xff]
      %v305 = vld [vmem:[%s278 + $0x98] sm:$0xff]
      %v306 = vld [vmem:[%s278 + $0xa0] sm:$0xff]
      %v307 = vld [vmem:[%s278 + $0xa8] sm:$0xff]
      %v308 = vld [vmem:[%s278 + $0xb0] sm:$0xff]
      %v309 = vld [vmem:[%s278 + $0xb8] sm:$0xff]
      %v310 = vld [vmem:[%s278 + $0xc0] sm:$0xff]
      %v311 = vld [vmem:[%s278 + $0xc8] sm:$0xff]
      %v312 = vld [vmem:[%s278 + $0xd0] sm:$0xff]
      %v313 = vld [vmem:[%s278 + $0xd8] sm:$0xff]
      %v314 = vld [vmem:[%s278 + $0xe0] sm:$0xff]
      %v315 = vld [vmem:[%s278 + $0xe8] sm:$0xff]
      %v316 = vld [vmem:[%s278 + $0xf0] sm:$0xff]
      %v317 = vld [vmem:[%s278 + $0xf8] sm:$0xff]
      %v318 = vld [vmem:[%s1] sm:$0xff]
      %v319 = vld [vmem:[%s1 + $0x8] sm:$0xff]
      %v320 = vld [vmem:[%s1 + $0x10] sm:$0xff]
      %v321 = vld [vmem:[%s1 + $0x18] sm:$0xff]
      %v322 = vld [vmem:[%s1 + $0x20] sm:$0xff]
      %v323 = vld [vmem:[%s1 + $0x28] sm:$0xff]
      %v324 = vld [vmem:[%s1 + $0x30] sm:$0xff]
      %v325 = vld [vmem:[%s1 + $0x38] sm:$0xff]
      %v326 = vld [vmem:[%s1 + $0x40] sm:$0xff]
      %v327 = vld [vmem:[%s1 + $0x48] sm:$0xff]
      %v328 = vld [vmem:[%s1 + $0x50] sm:$0xff]
      %v329 = vld [vmem:[%s1 + $0x58] sm:$0xff]
      %v330 = vld [vmem:[%s1 + $0x60] sm:$0xff]
      %v331 = vld [vmem:[%s1 + $0x68] sm:$0xff]
      %v332 = vld [vmem:[%s1 + $0x70] sm:$0xff]
      %v333 = vld [vmem:[%s1 + $0x78] sm:$0xff]
      %v334 = vld [vmem:[%s1 + $0x80] sm:$0xff]
      %v335 = vld [vmem:[%s1 + $0x88] sm:$0xff]
      %v336 = vld [vmem:[%s1 + $0x90] sm:$0xff]
      %v337 = vld [vmem:[%s1 + $0x98] sm:$0xff]
      %v338 = vld [vmem:[%s1 + $0xa0] sm:$0xff]
      %v339 = vld [vmem:[%s1 + $0xa8] sm:$0xff]
      %v340 = vld [vmem:[%s1 + $0xb0] sm:$0xff]
      %v341 = vld [vmem:[%s1 + $0xb8] sm:$0xff]
      %v342 = vld [vmem:[%s1 + $0xc0] sm:$0xff]
      %v343 = vld [vmem:[%s1 + $0xc8] sm:$0xff]
      %v344 = vld [vmem:[%s1 + $0xd0] sm:$0xff]
      %v345 = vld [vmem:[%s1 + $0xd8] sm:$0xff]
      %v346 = vld [vmem:[%s1 + $0xe0] sm:$0xff]
      %v347 = vld [vmem:[%s1 + $0xe8] sm:$0xff]
      %v348 = vld [vmem:[%s1 + $0xf0] sm:$0xff]
      %v349 = vld [vmem:[%s1 + $0xf8] sm:$0xff]
      %v350 = vld [vmem:[%s1 + $0x100] sm:$0xff]
      %v351 = vld [vmem:[%s1 + $0x108] sm:$0xff]
      %v352 = vld [vmem:[%s1 + $0x110] sm:$0xff]
      %v353 = vld [vmem:[%s1 + $0x118] sm:$0xff]
      %v354 = vld [vmem:[%s1 + $0x120] sm:$0xff]
      %v355 = vld [vmem:[%s1 + $0x128] sm:$0xff]
      %v356 = vld [vmem:[%s1 + $0x130] sm:$0xff]
      %v357 = vld [vmem:[%s1 + $0x138] sm:$0xff]
      %v358 = vld [vmem:[%s1 + $0x140] sm:$0xff]
      %v359 = vld [vmem:[%s1 + $0x148] sm:$0xff]
      %v360 = vld [vmem:[%s1 + $0x150] sm:$0xff]
      %v361 = vld [vmem:[%s1 + $0x158] sm:$0xff]
      %v362 = vld [vmem:[%s1 + $0x160] sm:$0xff]
      %v363 = vld [vmem:[%s1 + $0x168] sm:$0xff]
      %v364 = vld [vmem:[%s1 + $0x170] sm:$0xff]
      %v365 = vld [vmem:[%s1 + $0x178] sm:$0xff]
      %v366 = vld [vmem:[%s1 + $0x180] sm:$0xff]
      %v367 = vld [vmem:[%s1 + $0x188] sm:$0xff]
      %v368 = vld [vmem:[%s1 + $0x190] sm:$0xff]
      %v369 = vld [vmem:[%s1 + $0x198] sm:$0xff]
      %v370 = vld [vmem:[%s1 + $0x1a0] sm:$0xff]
      %v371 = vld [vmem:[%s1 + $0x1a8] sm:$0xff]
      %v372 = vld [vmem:[%s1 + $0x1b0] sm:$0xff]
      %v373 = vld [vmem:[%s1 + $0x1b8] sm:$0xff]
      %v374 = vld [vmem:[%s1 + $0x1c0] sm:$0xff]
      %v375 = vld [vmem:[%s1 + $0x1c8] sm:$0xff]
      %v376 = vld [vmem:[%s1 + $0x1d0] sm:$0xff]
      %v377 = vld [vmem:[%s1 + $0x1d8] sm:$0xff]
      %v378 = vld [vmem:[%s1 + $0x1e0] sm:$0xff]
      %v379 = vld [vmem:[%s1 + $0x1e8] sm:$0xff]
      %v380 = vld [vmem:[%s1 + $0x1f0] sm:$0xff]
      %v381 = vld [vmem:[%s1 + $0x1f8] sm:$0xff]
      %v382 = vld [vmem:[%s2] sm:$0x3]
      %v384 = vperm.slane %v382, 0
      %v385 = vperm.slane %v382, 1
      %v420 = vunpack.c.l.b16 %v286
      %v421 = vunpack.c.h.b16 %v286
      %v422 = vunpack.c.l.b16 %v287
      %v423 = vunpack.c.h.b16 %v287
      %v424 = vunpack.c.l.b16 %v288
      %v425 = vunpack.c.h.b16 %v288
      %v426 = vunpack.c.l.b16 %v289
      %v427 = vunpack.c.h.b16 %v289
      %v428 = vunpack.c.l.b16 %v290
      %v429 = vunpack.c.h.b16 %v290
      %v430 = vunpack.c.l.b16 %v291
      %v431 = vunpack.c.h.b16 %v291
      %v432 = vunpack.c.l.b16 %v292
      %v433 = vunpack.c.h.b16 %v292
      %v434 = vunpack.c.l.b16 %v293
      %v435 = vunpack.c.h.b16 %v293
      %v436 = vunpack.c.l.b16 %v294
      %v437 = vunpack.c.h.b16 %v294
      %v438 = vunpack.c.l.b16 %v295
      %v439 = vunpack.c.h.b16 %v295
      %v440 = vunpack.c.l.b16 %v296
      %v441 = vunpack.c.h.b16 %v296
      %v442 = vunpack.c.l.b16 %v297
      %v443 = vunpack.c.h.b16 %v297
      %v444 = vunpack.c.l.b16 %v298
      %v445 = vunpack.c.h.b16 %v298
      %v446 = vunpack.c.l.b16 %v299
      %v447 = vunpack.c.h.b16 %v299
      %v448 = vunpack.c.l.b16 %v300
      %v449 = vunpack.c.h.b16 %v300
      %v450 = vunpack.c.l.b16 %v301
      %v451 = vunpack.c.h.b16 %v301
      %v452 = vunpack.c.l.b16 %v302
      %v453 = vunpack.c.h.b16 %v302
      %v454 = vunpack.c.l.b16 %v303
      %v455 = vunpack.c.h.b16 %v303
      %v456 = vunpack.c.l.b16 %v304
      %v457 = vunpack.c.h.b16 %v304
      %v458 = vunpack.c.l.b16 %v305
      %v459 = vunpack.c.h.b16 %v305
      %v460 = vunpack.c.l.b16 %v306
      %v461 = vunpack.c.h.b16 %v306
      %v462 = vunpack.c.l.b16 %v307
      %v463 = vunpack.c.h.b16 %v307
      %v464 = vunpack.c.l.b16 %v308
      %v465 = vunpack.c.h.b16 %v308
      %v466 = vunpack.c.l.b16 %v309
      %v467 = vunpack.c.h.b16 %v309
      %v468 = vunpack.c.l.b16 %v310
      %v469 = vunpack.c.h.b16 %v310
      %v470 = vunpack.c.l.b16 %v311
      %v471 = vunpack.c.h.b16 %v311
      %v472 = vunpack.c.l.b16 %v312
      %v473 = vunpack.c.h.b16 %v312
      %v474 = vunpack.c.l.b16 %v313
      %v475 = vunpack.c.h.b16 %v313
      %v476 = vunpack.c.l.b16 %v314
      %v477 = vunpack.c.h.b16 %v314
      %v478 = vunpack.c.l.b16 %v315
      %v479 = vunpack.c.h.b16 %v315
      %v480 = vunpack.c.l.b16 %v316
      %v481 = vunpack.c.h.b16 %v316
      %v482 = vunpack.c.l.b16 %v317
      %v483 = vunpack.c.h.b16 %v317
      %v484 = vpack.c.b16 %v424, %v420
      %v485 = vpack.c.b16 %v425, %v421
      %v486 = vpack.c.b16 %v426, %v422
      %v487 = vpack.c.b16 %v427, %v423
      %v488 = vpack.c.b16 %v432, %v428
      %v489 = vpack.c.b16 %v433, %v429
      %v490 = vpack.c.b16 %v434, %v430
      %v491 = vpack.c.b16 %v435, %v431
      %v492 = vpack.c.b16 %v440, %v436
      %v493 = vpack.c.b16 %v441, %v437
      %v494 = vpack.c.b16 %v442, %v438
      %v495 = vpack.c.b16 %v443, %v439
      %v496 = vpack.c.b16 %v448, %v444
      %v497 = vpack.c.b16 %v449, %v445
      %v498 = vpack.c.b16 %v450, %v446
      %v499 = vpack.c.b16 %v451, %v447
      %v500 = vpack.c.b16 %v456, %v452
      %v501 = vpack.c.b16 %v457, %v453
      %v502 = vpack.c.b16 %v458, %v454
      %v503 = vpack.c.b16 %v459, %v455
      %v504 = vpack.c.b16 %v464, %v460
      %v505 = vpack.c.b16 %v465, %v461
      %v506 = vpack.c.b16 %v466, %v462
      %v507 = vpack.c.b16 %v467, %v463
      %v508 = vpack.c.b16 %v472, %v468
      %v509 = vpack.c.b16 %v473, %v469
      %v510 = vpack.c.b16 %v474, %v470
      %v511 = vpack.c.b16 %v475, %v471
      %v512 = vpack.c.b16 %v480, %v476
      %v513 = vpack.c.b16 %v481, %v477
      %v514 = vpack.c.b16 %v482, %v478
      %v515 = vpack.c.b16 %v483, %v479
      %v612 = vunpack.c.l.b16 %v318
      %v613 = vunpack.c.h.b16 %v318
      %v614 = vunpack.c.l.b16 %v319
      %v615 = vunpack.c.h.b16 %v319
      %v616 = vunpack.c.l.b16 %v320
      %v617 = vunpack.c.h.b16 %v320
      %v618 = vunpack.c.l.b16 %v321
      %v619 = vunpack.c.h.b16 %v321
      %v620 = vunpack.c.l.b16 %v322
      %v621 = vunpack.c.h.b16 %v322
      %v622 = vunpack.c.l.b16 %v323
      %v623 = vunpack.c.h.b16 %v323
      %v624 = vunpack.c.l.b16 %v324
      %v625 = vunpack.c.h.b16 %v324
      %v626 = vunpack.c.l.b16 %v325
      %v627 = vunpack.c.h.b16 %v325
      %v628 = vunpack.c.l.b16 %v326
      %v629 = vunpack.c.h.b16 %v326
      %v630 = vunpack.c.l.b16 %v327
      %v631 = vunpack.c.h.b16 %v327
      %v632 = vunpack.c.l.b16 %v328
      %v633 = vunpack.c.h.b16 %v328
      %v634 = vunpack.c.l.b16 %v329
      %v635 = vunpack.c.h.b16 %v329
      %v636 = vunpack.c.l.b16 %v330
      %v637 = vunpack.c.h.b16 %v330
      %v638 = vunpack.c.l.b16 %v331
      %v639 = vunpack.c.h.b16 %v331
      %v640 = vunpack.c.l.b16 %v332
      %v641 = vunpack.c.h.b16 %v332
      %v642 = vunpack.c.l.b16 %v333
      %v643 = vunpack.c.h.b16 %v333
      %v644 = vunpack.c.l.b16 %v334
      %v645 = vunpack.c.h.b16 %v334
      %v646 = vunpack.c.l.b16 %v335
      %v647 = vunpack.c.h.b16 %v335
      %v648 = vunpack.c.l.b16 %v336
      %v649 = vunpack.c.h.b16 %v336
      %v650 = vunpack.c.l.b16 %v337
      %v651 = vunpack.c.h.b16 %v337
      %v652 = vunpack.c.l.b16 %v338
      %v653 = vunpack.c.h.b16 %v338
      %v654 = vunpack.c.l.b16 %v339
      %v655 = vunpack.c.h.b16 %v339
      %v656 = vunpack.c.l.b16 %v340
      %v657 = vunpack.c.h.b16 %v340
      %v658 = vunpack.c.l.b16 %v341
      %v659 = vunpack.c.h.b16 %v341
      %v660 = vunpack.c.l.b16 %v342
      %v661 = vunpack.c.h.b16 %v342
      %v662 = vunpack.c.l.b16 %v343
      %v663 = vunpack.c.h.b16 %v343
      %v664 = vunpack.c.l.b16 %v344
      %v665 = vunpack.c.h.b16 %v344
      %v666 = vunpack.c.l.b16 %v345
      %v667 = vunpack.c.h.b16 %v345
      %v668 = vunpack.c.l.b16 %v346
      %v669 = vunpack.c.h.b16 %v346
      %v670 = vunpack.c.l.b16 %v347
      %v671 = vunpack.c.h.b16 %v347
      %v672 = vunpack.c.l.b16 %v348
      %v673 = vunpack.c.h.b16 %v348
      %v674 = vunpack.c.l.b16 %v349
      %v675 = vunpack.c.h.b16 %v349
      %v676 = vunpack.c.l.b16 %v350
      %v677 = vunpack.c.h.b16 %v350
      %v678 = vunpack.c.l.b16 %v351
      %v679 = vunpack.c.h.b16 %v351
      %v680 = vunpack.c.l.b16 %v352
      %v681 = vunpack.c.h.b16 %v352
      %v682 = vunpack.c.l.b16 %v353
      %v683 = vunpack.c.h.b16 %v353
      %v684 = vunpack.c.l.b16 %v354
      %v685 = vunpack.c.h.b16 %v354
      %v686 = vunpack.c.l.b16 %v355
      %v687 = vunpack.c.h.b16 %v355
      %v688 = vunpack.c.l.b16 %v356
      %v689 = vunpack.c.h.b16 %v356
      %v690 = vunpack.c.l.b16 %v357
      %v691 = vunpack.c.h.b16 %v357
      %v692 = vunpack.c.l.b16 %v358
      %v693 = vunpack.c.h.b16 %v358
      %v694 = vunpack.c.l.b16 %v359
      %v695 = vunpack.c.h.b16 %v359
      %v696 = vunpack.c.l.b16 %v360
      %v697 = vunpack.c.h.b16 %v360
      %v698 = vunpack.c.l.b16 %v361
      %v699 = vunpack.c.h.b16 %v361
      %v700 = vunpack.c.l.b16 %v362
      %v701 = vunpack.c.h.b16 %v362
      %v702 = vunpack.c.l.b16 %v363
      %v703 = vunpack.c.h.b16 %v363
      %v704 = vunpack.c.l.b16 %v364
      %v705 = vunpack.c.h.b16 %v364
      %v706 = vunpack.c.l.b16 %v365
      %v707 = vunpack.c.h.b16 %v365
      %v708 = vunpack.c.l.b16 %v366
      %v709 = vunpack.c.h.b16 %v366
      %v710 = vunpack.c.l.b16 %v367
      %v711 = vunpack.c.h.b16 %v367
      %v712 = vunpack.c.l.b16 %v368
      %v713 = vunpack.c.h.b16 %v368
      %v714 = vunpack.c.l.b16 %v369
      %v715 = vunpack.c.h.b16 %v369
      %v716 = vunpack.c.l.b16 %v370
      %v717 = vunpack.c.h.b16 %v370
      %v718 = vunpack.c.l.b16 %v371
      %v719 = vunpack.c.h.b16 %v371
      %v720 = vunpack.c.l.b16 %v372
      %v721 = vunpack.c.h.b16 %v372
      %v722 = vunpack.c.l.b16 %v373
      %v723 = vunpack.c.h.b16 %v373
      %v724 = vunpack.c.l.b16 %v374
      %v725 = vunpack.c.h.b16 %v374
      %v726 = vunpack.c.l.b16 %v375
      %v727 = vunpack.c.h.b16 %v375
      %v728 = vunpack.c.l.b16 %v376
      %v729 = vunpack.c.h.b16 %v376
      %v730 = vunpack.c.l.b16 %v377
      %v731 = vunpack.c.h.b16 %v377
      %v732 = vunpack.c.l.b16 %v378
      %v733 = vunpack.c.h.b16 %v378
      %v734 = vunpack.c.l.b16 %v379
      %v735 = vunpack.c.h.b16 %v379
      %v736 = vunpack.c.l.b16 %v380
      %v737 = vunpack.c.h.b16 %v380
      %v738 = vunpack.c.l.b16 %v381
      %v739 = vunpack.c.h.b16 %v381
      %v740 = vpack.c.b16 %v614, %v612
      %v741 = vpack.c.b16 %v615, %v613
      %v742 = vpack.c.b16 %v618, %v616
      %v743 = vpack.c.b16 %v619, %v617
      %v744 = vpack.c.b16 %v622, %v620
      %v745 = vpack.c.b16 %v623, %v621
      %v746 = vpack.c.b16 %v626, %v624
      %v747 = vpack.c.b16 %v627, %v625
      %v748 = vpack.c.b16 %v630, %v628
      %v749 = vpack.c.b16 %v631, %v629
      %v750 = vpack.c.b16 %v634, %v632
      %v751 = vpack.c.b16 %v635, %v633
      %v752 = vpack.c.b16 %v638, %v636
      %v753 = vpack.c.b16 %v639, %v637
      %v754 = vpack.c.b16 %v642, %v640
      %v755 = vpack.c.b16 %v643, %v641
      %v756 = vpack.c.b16 %v646, %v644
      %v757 = vpack.c.b16 %v647, %v645
      %v758 = vpack.c.b16 %v650, %v648
      %v759 = vpack.c.b16 %v651, %v649
      %v760 = vpack.c.b16 %v654, %v652
      %v761 = vpack.c.b16 %v655, %v653
      %v762 = vpack.c.b16 %v658, %v656
      %v763 = vpack.c.b16 %v659, %v657
      %v764 = vpack.c.b16 %v662, %v660
      %v765 = vpack.c.b16 %v663, %v661
      %v766 = vpack.c.b16 %v666, %v664
      %v767 = vpack.c.b16 %v667, %v665
      %v768 = vpack.c.b16 %v670, %v668
      %v769 = vpack.c.b16 %v671, %v669
      %v770 = vpack.c.b16 %v674, %v672
      %v771 = vpack.c.b16 %v675, %v673
      %v772 = vpack.c.b16 %v678, %v676
      %v773 = vpack.c.b16 %v679, %v677
      %v774 = vpack.c.b16 %v682, %v680
      %v775 = vpack.c.b16 %v683, %v681
      %v776 = vpack.c.b16 %v686, %v684
      %v777 = vpack.c.b16 %v687, %v685
      %v778 = vpack.c.b16 %v690, %v688
      %v779 = vpack.c.b16 %v691, %v689
      %v780 = vpack.c.b16 %v694, %v692
      %v781 = vpack.c.b16 %v695, %v693
      %v782 = vpack.c.b16 %v698, %v696
      %v783 = vpack.c.b16 %v699, %v697
      %v784 = vpack.c.b16 %v702, %v700
      %v785 = vpack.c.b16 %v703, %v701
      %v786 = vpack.c.b16 %v706, %v704
      %v787 = vpack.c.b16 %v707, %v705
      %v788 = vpack.c.b16 %v710, %v708
      %v789 = vpack.c.b16 %v711, %v709
      %v790 = vpack.c.b16 %v714, %v712
      %v791 = vpack.c.b16 %v715, %v713
      %v792 = vpack.c.b16 %v718, %v716
      %v793 = vpack.c.b16 %v719, %v717
      %v794 = vpack.c.b16 %v722, %v720
      %v795 = vpack.c.b16 %v723, %v721
      %v796 = vpack.c.b16 %v726, %v724
      %v797 = vpack.c.b16 %v727, %v725
      %v798 = vpack.c.b16 %v730, %v728
      %v799 = vpack.c.b16 %v731, %v729
      %v800 = vpack.c.b16 %v734, %v732
      %v801 = vpack.c.b16 %v735, %v733
      %v802 = vpack.c.b16 %v738, %v736
      %v803 = vpack.c.b16 %v739, %v737
      %868 = vmatpush.bf16.msra.mxu0 %v754
      %869 = vmatpush.bf16.msra.mxu0 %v752
      %870 = vmatpush.bf16.msra.mxu0 %v750
      %871 = vmatpush.bf16.msra.mxu0 %v748
      %872 = vmatpush.bf16.msra.mxu0 %v746
      %873 = vmatpush.bf16.msra.mxu0 %v744
      %874 = vmatpush.bf16.msra.mxu0 %v742
      %875 = vmatpush.bf16.msra.mxu0 %v740
      %876 = vmatmul.bf16.gmra.mxu0 %v484
      %v877 = vpop.f32.mrf.mxu0
      %v878 = vadd.f32 %v384, %v877
      %v879 = vpop.f32.mrf.mxu0
      %v880 = vadd.f32 %v384, %v879
      %881 = vmatmul.bf16.gmra.mxu0 %v488
      %v882 = vpop.f32.mrf.mxu0
      %v883 = vadd.f32 %v384, %v882
      %v884 = vpop.f32.mrf.mxu0
      %v885 = vadd.f32 %v384, %v884
      %886 = vmatmul.bf16.gmra.mxu0 %v492
      %v887 = vpop.f32.mrf.mxu0
      %v888 = vadd.f32 %v384, %v887
      %v889 = vpop.f32.mrf.mxu0
      %v890 = vadd.f32 %v384, %v889
      %891 = vmatmul.bf16.gmra.mxu0 %v496
      %v892 = vpop.f32.mrf.mxu0
      %v893 = vadd.f32 %v384, %v892
      %v894 = vpop.f32.mrf.mxu0
      %v895 = vadd.f32 %v384, %v894
      %896 = vmatmul.bf16.gmra.mxu0 %v500
      %v897 = vpop.f32.mrf.mxu0
      %v898 = vadd.f32 %v384, %v897
      %v899 = vpop.f32.mrf.mxu0
      %v900 = vadd.f32 %v384, %v899
      %901 = vmatmul.bf16.gmra.mxu0 %v504
      %v902 = vpop.f32.mrf.mxu0
      %v903 = vadd.f32 %v384, %v902
      %v904 = vpop.f32.mrf.mxu0
      %v905 = vadd.f32 %v384, %v904
      %906 = vmatmul.bf16.gmra.mxu0 %v508
      %v907 = vpop.f32.mrf.mxu0
      %v908 = vadd.f32 %v384, %v907
      %v909 = vpop.f32.mrf.mxu0
      %v910 = vadd.f32 %v384, %v909
      %911 = vmatmul.bf16.gmra.mxu0 %v512
      %v912 = vpop.f32.mrf.mxu0
      %v913 = vadd.f32 %v384, %v912
      %v914 = vpop.f32.mrf.mxu0
      %v915 = vadd.f32 %v384, %v914
      %916 = vdwg.mxu0
      %917 = vmatpush.bf16.msra.mxu0 %v770
      %918 = vmatpush.bf16.msra.mxu0 %v768
      %919 = vmatpush.bf16.msra.mxu0 %v766
      %920 = vmatpush.bf16.msra.mxu0 %v764
      %921 = vmatpush.bf16.msra.mxu0 %v762
      %922 = vmatpush.bf16.msra.mxu0 %v760
      %923 = vmatpush.bf16.msra.mxu0 %v758
      %924 = vmatpush.bf16.msra.mxu0 %v756
      %925 = vmatmul.bf16.gmra.mxu0 %v485
      %v926 = vpop.f32.mrf.mxu0
      %v927 = vadd.f32 %v878, %v926
      %v928 = vpop.f32.mrf.mxu0
      %v929 = vadd.f32 %v880, %v928
      %930 = vmatmul.bf16.gmra.mxu0 %v489
      %v931 = vpop.f32.mrf.mxu0
      %v932 = vadd.f32 %v883, %v931
      %v933 = vpop.f32.mrf.mxu0
      %v934 = vadd.f32 %v885, %v933
      %935 = vmatmul.bf16.gmra.mxu0 %v493
      %v936 = vpop.f32.mrf.mxu0
      %v937 = vadd.f32 %v888, %v936
      %v938 = vpop.f32.mrf.mxu0
      %v939 = vadd.f32 %v890, %v938
      %940 = vmatmul.bf16.gmra.mxu0 %v497
      %v941 = vpop.f32.mrf.mxu0
      %v942 = vadd.f32 %v893, %v941
      %v943 = vpop.f32.mrf.mxu0
      %v944 = vadd.f32 %v895, %v943
      %945 = vmatmul.bf16.gmra.mxu0 %v501
      %v946 = vpop.f32.mrf.mxu0
      %v947 = vadd.f32 %v898, %v946
      %v948 = vpop.f32.mrf.mxu0
      %v949 = vadd.f32 %v900, %v948
      %950 = vmatmul.bf16.gmra.mxu0 %v505
      %v951 = vpop.f32.mrf.mxu0
      %v952 = vadd.f32 %v903, %v951
      %v953 = vpop.f32.mrf.mxu0
      %v954 = vadd.f32 %v905, %v953
      %955 = vmatmul.bf16.gmra.mxu0 %v509
      %v956 = vpop.f32.mrf.mxu0
      %v957 = vadd.f32 %v908, %v956
      %v958 = vpop.f32.mrf.mxu0
      %v959 = vadd.f32 %v910, %v958
      %960 = vmatmul.bf16.gmra.mxu0 %v513
      %v961 = vpop.f32.mrf.mxu0
      %v962 = vadd.f32 %v913, %v961
      %v963 = vpop.f32.mrf.mxu0
      %v964 = vadd.f32 %v915, %v963
      %965 = vdwg.mxu0
      %966 = vmatpush.bf16.msra.mxu0 %v786
      %967 = vmatpush.bf16.msra.mxu0 %v784
      %968 = vmatpush.bf16.msra.mxu0 %v782
      %969 = vmatpush.bf16.msra.mxu0 %v780
      %970 = vmatpush.bf16.msra.mxu0 %v778
      %971 = vmatpush.bf16.msra.mxu0 %v776
      %972 = vmatpush.bf16.msra.mxu0 %v774
      %973 = vmatpush.bf16.msra.mxu0 %v772
      %974 = vmatmul.bf16.gmra.mxu0 %v486
      %v975 = vpop.f32.mrf.mxu0
      %v976 = vadd.f32 %v927, %v975
      %v977 = vpop.f32.mrf.mxu0
      %v978 = vadd.f32 %v929, %v977
      %979 = vmatmul.bf16.gmra.mxu0 %v490
      %v980 = vpop.f32.mrf.mxu0
      %v981 = vadd.f32 %v932, %v980
      %v982 = vpop.f32.mrf.mxu0
      %v983 = vadd.f32 %v934, %v982
      %984 = vmatmul.bf16.gmra.mxu0 %v494
      %v985 = vpop.f32.mrf.mxu0
      %v986 = vadd.f32 %v937, %v985
      %v987 = vpop.f32.mrf.mxu0
      %v988 = vadd.f32 %v939, %v987
      %989 = vmatmul.bf16.gmra.mxu0 %v498
      %v990 = vpop.f32.mrf.mxu0
      %v991 = vadd.f32 %v942, %v990
      %v992 = vpop.f32.mrf.mxu0
      %v993 = vadd.f32 %v944, %v992
      %994 = vmatmul.bf16.gmra.mxu0 %v502
      %v995 = vpop.f32.mrf.mxu0
      %v996 = vadd.f32 %v947, %v995
      %v997 = vpop.f32.mrf.mxu0
      %v998 = vadd.f32 %v949, %v997
      %999 = vmatmul.bf16.gmra.mxu0 %v506
      %v1000 = vpop.f32.mrf.mxu0
      %v1001 = vadd.f32 %v952, %v1000
      %v1002 = vpop.f32.mrf.mxu0
      %v1003 = vadd.f32 %v954, %v1002
      %1004 = vmatmul.bf16.gmra.mxu0 %v510
      %v1005 = vpop.f32.mrf.mxu0
      %v1006 = vadd.f32 %v957, %v1005
      %v1007 = vpop.f32.mrf.mxu0
      %v1008 = vadd.f32 %v959, %v1007
      %1009 = vmatmul.bf16.gmra.mxu0 %v514
      %v1010 = vpop.f32.mrf.mxu0
      %v1011 = vadd.f32 %v962, %v1010
      %v1012 = vpop.f32.mrf.mxu0
      %v1013 = vadd.f32 %v964, %v1012
      %1014 = vdwg.mxu0
      %1015 = vmatpush.bf16.msra.mxu0 %v802
      %1016 = vmatpush.bf16.msra.mxu0 %v800
      %1017 = vmatpush.bf16.msra.mxu0 %v798
      %1018 = vmatpush.bf16.msra.mxu0 %v796
      %1019 = vmatpush.bf16.msra.mxu0 %v794
      %1020 = vmatpush.bf16.msra.mxu0 %v792
      %1021 = vmatpush.bf16.msra.mxu0 %v790
      %1022 = vmatpush.bf16.msra.mxu0 %v788
      %1023 = vmatmul.bf16.gmra.mxu0 %v487
      %v1024 = vpop.f32.mrf.mxu0
      %v1025 = vadd.f32 %v976, %v1024
      %v1026 = vpop.f32.mrf.mxu0
      %v1027 = vadd.f32 %v978, %v1026
      %1028 = vmatmul.bf16.gmra.mxu0 %v491
      %v1029 = vpop.f32.mrf.mxu0
      %v1030 = vadd.f32 %v981, %v1029
      %v1031 = vpop.f32.mrf.mxu0
      %v1032 = vadd.f32 %v983, %v1031
      %1033 = vmatmul.bf16.gmra.mxu0 %v495
      %v1034 = vpop.f32.mrf.mxu0
      %v1035 = vadd.f32 %v986, %v1034
      %v1036 = vpop.f32.mrf.mxu0
      %v1037 = vadd.f32 %v988, %v1036
      %1038 = vmatmul.bf16.gmra.mxu0 %v499
      %v1039 = vpop.f32.mrf.mxu0
      %v1040 = vadd.f32 %v991, %v1039
      %v1041 = vpop.f32.mrf.mxu0
      %v1042 = vadd.f32 %v993, %v1041
      %1043 = vmatmul.bf16.gmra.mxu0 %v503
      %v1044 = vpop.f32.mrf.mxu0
      %v1045 = vadd.f32 %v996, %v1044
      %v1046 = vpop.f32.mrf.mxu0
      %v1047 = vadd.f32 %v998, %v1046
      %1048 = vmatmul.bf16.gmra.mxu0 %v507
      %v1049 = vpop.f32.mrf.mxu0
      %v1050 = vadd.f32 %v1001, %v1049
      %v1051 = vpop.f32.mrf.mxu0
      %v1052 = vadd.f32 %v1003, %v1051
      %1053 = vmatmul.bf16.gmra.mxu0 %v511
      %v1054 = vpop.f32.mrf.mxu0
      %v1055 = vadd.f32 %v1006, %v1054
      %v1056 = vpop.f32.mrf.mxu0
      %v1057 = vadd.f32 %v1008, %v1056
      %1058 = vmatmul.bf16.gmra.mxu0 %v515
      %v1059 = vpop.f32.mrf.mxu0
      %v1060 = vadd.f32 %v1011, %v1059
      %v1061 = vpop.f32.mrf.mxu0
      %v1062 = vadd.f32 %v1013, %v1061
      %1063 = vdwg.mxu0
      %1064 = vmatpush.bf16.msra.mxu0 %v755
      %1065 = vmatpush.bf16.msra.mxu0 %v753
      %1066 = vmatpush.bf16.msra.mxu0 %v751
      %1067 = vmatpush.bf16.msra.mxu0 %v749
      %1068 = vmatpush.bf16.msra.mxu0 %v747
      %1069 = vmatpush.bf16.msra.mxu0 %v745
      %1070 = vmatpush.bf16.msra.mxu0 %v743
      %1071 = vmatpush.bf16.msra.mxu0 %v741
      %1072 = vmatmul.bf16.gmra.mxu0 %v484
      %v1073 = vpop.f32.mrf.mxu0
      %v1074 = vadd.f32 %v385, %v1073
      %v1075 = vpop.f32.mrf.mxu0
      %v1076 = vadd.f32 %v385, %v1075
      %1077 = vmatmul.bf16.gmra.mxu0 %v488
      %v1078 = vpop.f32.mrf.mxu0
      %v1079 = vadd.f32 %v385, %v1078
      %v1080 = vpop.f32.mrf.mxu0
      %v1081 = vadd.f32 %v385, %v1080
      %1082 = vmatmul.bf16.gmra.mxu0 %v492
      %v1083 = vpop.f32.mrf.mxu0
      %v1084 = vadd.f32 %v385, %v1083
      %v1085 = vpop.f32.mrf.mxu0
      %v1086 = vadd.f32 %v385, %v1085
      %1087 = vmatmul.bf16.gmra.mxu0 %v496
      %v1088 = vpop.f32.mrf.mxu0
      %v1089 = vadd.f32 %v385, %v1088
      %v1090 = vpop.f32.mrf.mxu0
      %v1091 = vadd.f32 %v385, %v1090
      %1092 = vmatmul.bf16.gmra.mxu0 %v500
      %v1093 = vpop.f32.mrf.mxu0
      %v1094 = vadd.f32 %v385, %v1093
      %v1095 = vpop.f32.mrf.mxu0
      %v1096 = vadd.f32 %v385, %v1095
      %1097 = vmatmul.bf16.gmra.mxu0 %v504
      %v1098 = vpop.f32.mrf.mxu0
      %v1099 = vadd.f32 %v385, %v1098
      %v1100 = vpop.f32.mrf.mxu0
      %v1101 = vadd.f32 %v385, %v1100
      %1102 = vmatmul.bf16.gmra.mxu0 %v508
      %v1103 = vpop.f32.mrf.mxu0
      %v1104 = vadd.f32 %v385, %v1103
      %v1105 = vpop.f32.mrf.mxu0
      %v1106 = vadd.f32 %v385, %v1105
      %1107 = vmatmul.bf16.gmra.mxu0 %v512
      %v1108 = vpop.f32.mrf.mxu0
      %v1109 = vadd.f32 %v385, %v1108
      %v1110 = vpop.f32.mrf.mxu0
      %v1111 = vadd.f32 %v385, %v1110
      %1112 = vdwg.mxu0
      %1113 = vmatpush.bf16.msra.mxu0 %v771
      %1114 = vmatpush.bf16.msra.mxu0 %v769
      %1115 = vmatpush.bf16.msra.mxu0 %v767
      %1116 = vmatpush.bf16.msra.mxu0 %v765
      %1117 = vmatpush.bf16.msra.mxu0 %v763
      %1118 = vmatpush.bf16.msra.mxu0 %v761
      %1119 = vmatpush.bf16.msra.mxu0 %v759
      %1120 = vmatpush.bf16.msra.mxu0 %v757
      %1121 = vmatmul.bf16.gmra.mxu0 %v485
      %v1122 = vpop.f32.mrf.mxu0
      %v1123 = vadd.f32 %v1074, %v1122
      %v1124 = vpop.f32.mrf.mxu0
      %v1125 = vadd.f32 %v1076, %v1124
      %1126 = vmatmul.bf16.gmra.mxu0 %v489
      %v1127 = vpop.f32.mrf.mxu0
      %v1128 = vadd.f32 %v1079, %v1127
      %v1129 = vpop.f32.mrf.mxu0
      %v1130 = vadd.f32 %v1081, %v1129
      %1131 = vmatmul.bf16.gmra.mxu0 %v493
      %v1132 = vpop.f32.mrf.mxu0
      %v1133 = vadd.f32 %v1084, %v1132
      %v1134 = vpop.f32.mrf.mxu0
      %v1135 = vadd.f32 %v1086, %v1134
      %1136 = vmatmul.bf16.gmra.mxu0 %v497
      %v1137 = vpop.f32.mrf.mxu0
      %v1138 = vadd.f32 %v1089, %v1137
      %v1139 = vpop.f32.mrf.mxu0
      %v1140 = vadd.f32 %v1091, %v1139
      %1141 = vmatmul.bf16.gmra.mxu0 %v501
      %v1142 = vpop.f32.mrf.mxu0
      %v1143 = vadd.f32 %v1094, %v1142
      %v1144 = vpop.f32.mrf.mxu0
      %v1145 = vadd.f32 %v1096, %v1144
      %1146 = vmatmul.bf16.gmra.mxu0 %v505
      %v1147 = vpop.f32.mrf.mxu0
      %v1148 = vadd.f32 %v1099, %v1147
      %v1149 = vpop.f32.mrf.mxu0
      %v1150 = vadd.f32 %v1101, %v1149
      %1151 = vmatmul.bf16.gmra.mxu0 %v509
      %v1152 = vpop.f32.mrf.mxu0
      %v1153 = vadd.f32 %v1104, %v1152
      %v1154 = vpop.f32.mrf.mxu0
      %v1155 = vadd.f32 %v1106, %v1154
      %1156 = vmatmul.bf16.gmra.mxu0 %v513
      %v1157 = vpop.f32.mrf.mxu0
      %v1158 = vadd.f32 %v1109, %v1157
      %v1159 = vpop.f32.mrf.mxu0
      %v1160 = vadd.f32 %v1111, %v1159
      %1161 = vdwg.mxu0
      %1162 = vmatpush.bf16.msra.mxu0 %v787
      %1163 = vmatpush.bf16.msra.mxu0 %v785
      %1164 = vmatpush.bf16.msra.mxu0 %v783
      %1165 = vmatpush.bf16.msra.mxu0 %v781
      %1166 = vmatpush.bf16.msra.mxu0 %v779
      %1167 = vmatpush.bf16.msra.mxu0 %v777
      %1168 = vmatpush.bf16.msra.mxu0 %v775
      %1169 = vmatpush.bf16.msra.mxu0 %v773
      %1170 = vmatmul.bf16.gmra.mxu0 %v486
      %v1171 = vpop.f32.mrf.mxu0
      %v1172 = vadd.f32 %v1123, %v1171
      %v1173 = vpop.f32.mrf.mxu0
      %v1174 = vadd.f32 %v1125, %v1173
      %1175 = vmatmul.bf16.gmra.mxu0 %v490
      %v1176 = vpop.f32.mrf.mxu0
      %v1177 = vadd.f32 %v1128, %v1176
      %v1178 = vpop.f32.mrf.mxu0
      %v1179 = vadd.f32 %v1130, %v1178
      %1180 = vmatmul.bf16.gmra.mxu0 %v494
      %v1181 = vpop.f32.mrf.mxu0
      %v1182 = vadd.f32 %v1133, %v1181
      %v1183 = vpop.f32.mrf.mxu0
      %v1184 = vadd.f32 %v1135, %v1183
      %1185 = vmatmul.bf16.gmra.mxu0 %v498
      %v1186 = vpop.f32.mrf.mxu0
      %v1187 = vadd.f32 %v1138, %v1186
      %v1188 = vpop.f32.mrf.mxu0
      %v1189 = vadd.f32 %v1140, %v1188
      %1190 = vmatmul.bf16.gmra.mxu0 %v502
      %v1191 = vpop.f32.mrf.mxu0
      %v1192 = vadd.f32 %v1143, %v1191
      %v1193 = vpop.f32.mrf.mxu0
      %v1194 = vadd.f32 %v1145, %v1193
      %1195 = vmatmul.bf16.gmra.mxu0 %v506
      %v1196 = vpop.f32.mrf.mxu0
      %v1197 = vadd.f32 %v1148, %v1196
      %v1198 = vpop.f32.mrf.mxu0
      %v1199 = vadd.f32 %v1150, %v1198
      %1200 = vmatmul.bf16.gmra.mxu0 %v510
      %v1201 = vpop.f32.mrf.mxu0
      %v1202 = vadd.f32 %v1153, %v1201
      %v1203 = vpop.f32.mrf.mxu0
      %v1204 = vadd.f32 %v1155, %v1203
      %1205 = vmatmul.bf16.gmra.mxu0 %v514
      %v1206 = vpop.f32.mrf.mxu0
      %v1207 = vadd.f32 %v1158, %v1206
      %v1208 = vpop.f32.mrf.mxu0
      %v1209 = vadd.f32 %v1160, %v1208
      %1210 = vdwg.mxu0
      %1211 = vmatpush.bf16.msra.mxu0 %v803
      %1212 = vmatpush.bf16.msra.mxu0 %v801
      %1213 = vmatpush.bf16.msra.mxu0 %v799
      %1214 = vmatpush.bf16.msra.mxu0 %v797
      %1215 = vmatpush.bf16.msra.mxu0 %v795
      %1216 = vmatpush.bf16.msra.mxu0 %v793
      %1217 = vmatpush.bf16.msra.mxu0 %v791
      %1218 = vmatpush.bf16.msra.mxu0 %v789
      %1219 = vmatmul.bf16.gmra.mxu0 %v487
      %v1220 = vpop.f32.mrf.mxu0
      %v1221 = vadd.f32 %v1172, %v1220
      %v1222 = vpop.f32.mrf.mxu0
      %v1223 = vadd.f32 %v1174, %v1222
      %1224 = vmatmul.bf16.gmra.mxu0 %v491
      %v1225 = vpop.f32.mrf.mxu0
      %v1226 = vadd.f32 %v1177, %v1225
      %v1227 = vpop.f32.mrf.mxu0
      %v1228 = vadd.f32 %v1179, %v1227
      %1229 = vmatmul.bf16.gmra.mxu0 %v495
      %v1230 = vpop.f32.mrf.mxu0
      %v1231 = vadd.f32 %v1182, %v1230
      %v1232 = vpop.f32.mrf.mxu0
      %v1233 = vadd.f32 %v1184, %v1232
      %1234 = vmatmul.bf16.gmra.mxu0 %v499
      %v1235 = vpop.f32.mrf.mxu0
      %v1236 = vadd.f32 %v1187, %v1235
      %v1237 = vpop.f32.mrf.mxu0
      %v1238 = vadd.f32 %v1189, %v1237
      %1239 = vmatmul.bf16.gmra.mxu0 %v503
      %v1240 = vpop.f32.mrf.mxu0
      %v1241 = vadd.f32 %v1192, %v1240
      %v1242 = vpop.f32.mrf.mxu0
      %v1243 = vadd.f32 %v1194, %v1242
      %1244 = vmatmul.bf16.gmra.mxu0 %v507
      %v1245 = vpop.f32.mrf.mxu0
      %v1246 = vadd.f32 %v1197, %v1245
      %v1247 = vpop.f32.mrf.mxu0
      %v1248 = vadd.f32 %v1199, %v1247
      %1249 = vmatmul.bf16.gmra.mxu0 %v511
      %v1250 = vpop.f32.mrf.mxu0
      %v1251 = vadd.f32 %v1202, %v1250
      %v1252 = vpop.f32.mrf.mxu0
      %v1253 = vadd.f32 %v1204, %v1252
      %1254 = vmatmul.bf16.gmra.mxu0 %v515
      %v1255 = vpop.f32.mrf.mxu0
      %v1256 = vadd.f32 %v1207, %v1255
      %v1257 = vpop.f32.mrf.mxu0
      %v1258 = vadd.f32 %v1209, %v1257
      %1259 = vdwg.mxu0
      %v1260 = vmax.f32 %v1025, 0.0
      %v1261 = vmax.f32 %v1221, 0.0
      %v1262 = vmax.f32 %v1027, 0.0
      %v1263 = vmax.f32 %v1223, 0.0
      %v1264 = vmax.f32 %v1030, 0.0
      %v1265 = vmax.f32 %v1226, 0.0
      %v1266 = vmax.f32 %v1032, 0.0
      %v1267 = vmax.f32 %v1228, 0.0
      %v1268 = vmax.f32 %v1035, 0.0
      %v1269 = vmax.f32 %v1231, 0.0
      %v1270 = vmax.f32 %v1037, 0.0
      %v1271 = vmax.f32 %v1233, 0.0
      %v1272 = vmax.f32 %v1040, 0.0
      %v1273 = vmax.f32 %v1236, 0.0
      %v1274 = vmax.f32 %v1042, 0.0
      %v1275 = vmax.f32 %v1238, 0.0
      %v1276 = vmax.f32 %v1045, 0.0
      %v1277 = vmax.f32 %v1241, 0.0
      %v1278 = vmax.f32 %v1047, 0.0
      %v1279 = vmax.f32 %v1243, 0.0
      %v1280 = vmax.f32 %v1050, 0.0
      %v1281 = vmax.f32 %v1246, 0.0
      %v1282 = vmax.f32 %v1052, 0.0
      %v1283 = vmax.f32 %v1248, 0.0
      %v1284 = vmax.f32 %v1055, 0.0
      %v1285 = vmax.f32 %v1251, 0.0
      %v1286 = vmax.f32 %v1057, 0.0
      %v1287 = vmax.f32 %v1253, 0.0
      %v1288 = vmax.f32 %v1060, 0.0
      %v1289 = vmax.f32 %v1256, 0.0
      %v1290 = vmax.f32 %v1062, 0.0
      %v1291 = vmax.f32 %v1258, 0.0
      %v1292 = vpack.c.bf16 %v1262, %v1260
      %v1293 = vpack.c.bf16 %v1263, %v1261
      %v1294 = vpack.c.bf16 %v1266, %v1264
      %v1295 = vpack.c.bf16 %v1267, %v1265
      %v1296 = vpack.c.bf16 %v1270, %v1268
      %v1297 = vpack.c.bf16 %v1271, %v1269
      %v1298 = vpack.c.bf16 %v1274, %v1272
      %v1299 = vpack.c.bf16 %v1275, %v1273
      %v1300 = vpack.c.bf16 %v1278, %v1276
      %v1301 = vpack.c.bf16 %v1279, %v1277
      %v1302 = vpack.c.bf16 %v1282, %v1280
      %v1303 = vpack.c.bf16 %v1283, %v1281
      %v1304 = vpack.c.bf16 %v1286, %v1284
      %v1305 = vpack.c.bf16 %v1287, %v1285
      %v1306 = vpack.c.bf16 %v1290, %v1288
      %v1307 = vpack.c.bf16 %v1291, %v1289
      %v1308 = vld [vmem:[%s3] sm:$0xf]
      %v1309 = vld [vmem:[%s3 + $0x4] sm:$0xf]
      %v1310 = vld [vmem:[%s3 + $0x8] sm:$0xf]
      %v1311 = vld [vmem:[%s3 + $0xc] sm:$0xf]
      %v1312 = vld [vmem:[%s3 + $0x10] sm:$0xf]
      %v1313 = vld [vmem:[%s3 + $0x14] sm:$0xf]
      %v1314 = vld [vmem:[%s3 + $0x18] sm:$0xf]
      %v1315 = vld [vmem:[%s3 + $0x1c] sm:$0xf]
      %v1316 = vld [vmem:[%s3 + $0x20] sm:$0xf]
      %v1317 = vld [vmem:[%s3 + $0x24] sm:$0xf]
      %v1318 = vld [vmem:[%s3 + $0x28] sm:$0xf]
      %v1319 = vld [vmem:[%s3 + $0x2c] sm:$0xf]
      %v1320 = vld [vmem:[%s3 + $0x30] sm:$0xf]
      %v1321 = vld [vmem:[%s3 + $0x34] sm:$0xf]
      %v1322 = vld [vmem:[%s3 + $0x38] sm:$0xf]
      %v1323 = vld [vmem:[%s3 + $0x3c] sm:$0xf]
      %v1324 = vld [vmem:[%s3 + $0x40] sm:$0xf]
      %v1325 = vld [vmem:[%s3 + $0x44] sm:$0xf]
      %v1326 = vld [vmem:[%s3 + $0x48] sm:$0xf]
      %v1327 = vld [vmem:[%s3 + $0x4c] sm:$0xf]
      %v1328 = vld [vmem:[%s3 + $0x50] sm:$0xf]
      %v1329 = vld [vmem:[%s3 + $0x54] sm:$0xf]
      %v1330 = vld [vmem:[%s3 + $0x58] sm:$0xf]
      %v1331 = vld [vmem:[%s3 + $0x5c] sm:$0xf]
      %v1332 = vld [vmem:[%s3 + $0x60] sm:$0xf]
      %v1333 = vld [vmem:[%s3 + $0x64] sm:$0xf]
      %v1334 = vld [vmem:[%s3 + $0x68] sm:$0xf]
      %v1335 = vld [vmem:[%s3 + $0x6c] sm:$0xf]
      %v1336 = vld [vmem:[%s3 + $0x70] sm:$0xf]
      %v1337 = vld [vmem:[%s3 + $0x74] sm:$0xf]
      %v1338 = vld [vmem:[%s3 + $0x78] sm:$0xf]
      %v1339 = vld [vmem:[%s3 + $0x7c] sm:$0xf]
      %v1340 = vld [vmem:[%s4] sm:$0x1]
      %v1342 = vperm.slane %v1340, 0
      %v1376 = vunpack.c.l.b16 %v1308
      %v1377 = vunpack.c.l.b16 %v1309
      %v1378 = vunpack.c.l.b16 %v1310
      %v1379 = vunpack.c.l.b16 %v1311
      %v1380 = vunpack.c.l.b16 %v1312
      %v1381 = vunpack.c.l.b16 %v1313
      %v1382 = vunpack.c.l.b16 %v1314
      %v1383 = vunpack.c.l.b16 %v1315
      %v1384 = vunpack.c.l.b16 %v1316
      %v1385 = vunpack.c.l.b16 %v1317
      %v1386 = vunpack.c.l.b16 %v1318
      %v1387 = vunpack.c.l.b16 %v1319
      %v1388 = vunpack.c.l.b16 %v1320
      %v1389 = vunpack.c.l.b16 %v1321
      %v1390 = vunpack.c.l.b16 %v1322
      %v1391 = vunpack.c.l.b16 %v1323
      %v1392 = vunpack.c.l.b16 %v1324
      %v1393 = vunpack.c.l.b16 %v1325
      %v1394 = vunpack.c.l.b16 %v1326
      %v1395 = vunpack.c.l.b16 %v1327
      %v1396 = vunpack.c.l.b16 %v1328
      %v1397 = vunpack.c.l.b16 %v1329
      %v1398 = vunpack.c.l.b16 %v1330
      %v1399 = vunpack.c.l.b16 %v1331
      %v1400 = vunpack.c.l.b16 %v1332
      %v1401 = vunpack.c.l.b16 %v1333
      %v1402 = vunpack.c.l.b16 %v1334
      %v1403 = vunpack.c.l.b16 %v1335
      %v1404 = vunpack.c.l.b16 %v1336
      %v1405 = vunpack.c.l.b16 %v1337
      %v1406 = vunpack.c.l.b16 %v1338
      %v1407 = vunpack.c.l.b16 %v1339
      %v1408 = vpack.c.b16 %v1377, %v1376
      %v1409 = vpack.c.b16 %v1379, %v1378
      %v1410 = vpack.c.b16 %v1381, %v1380
      %v1411 = vpack.c.b16 %v1383, %v1382
      %v1412 = vpack.c.b16 %v1385, %v1384
      %v1413 = vpack.c.b16 %v1387, %v1386
      %v1414 = vpack.c.b16 %v1389, %v1388
      %v1415 = vpack.c.b16 %v1391, %v1390
      %v1416 = vpack.c.b16 %v1393, %v1392
      %v1417 = vpack.c.b16 %v1395, %v1394
      %v1418 = vpack.c.b16 %v1397, %v1396
      %v1419 = vpack.c.b16 %v1399, %v1398
      %v1420 = vpack.c.b16 %v1401, %v1400
      %v1421 = vpack.c.b16 %v1403, %v1402
      %v1422 = vpack.c.b16 %v1405, %v1404
      %v1423 = vpack.c.b16 %v1407, %v1406
      %1440 = vmatpush.bf16.msra.mxu0 %v1415
      %1441 = vmatpush.bf16.msra.mxu0 %v1414
      %1442 = vmatpush.bf16.msra.mxu0 %v1413
      %1443 = vmatpush.bf16.msra.mxu0 %v1412
      %1444 = vmatpush.bf16.msra.mxu0 %v1411
      %1445 = vmatpush.bf16.msra.mxu0 %v1410
      %1446 = vmatpush.bf16.msra.mxu0 %v1409
      %1447 = vmatpush.bf16.msra.mxu0 %v1408
      %1448 = vmatmul.bf16.gmra.mxu0 %v1292
      %v1449 = vpop.f32.mrf.mxu0
      %v1450 = vadd.f32 %v1342, %v1449
      %v1451 = vpop.f32.mrf.mxu0
      %v1452 = vadd.f32 %v1342, %v1451
      %1453 = vmatmul.bf16.gmra.mxu0 %v1294
      %v1454 = vpop.f32.mrf.mxu0
      %v1455 = vadd.f32 %v1342, %v1454
      %v1456 = vpop.f32.mrf.mxu0
      %v1457 = vadd.f32 %v1342, %v1456
      %1458 = vmatmul.bf16.gmra.mxu0 %v1296
      %v1459 = vpop.f32.mrf.mxu0
      %v1460 = vadd.f32 %v1342, %v1459
      %v1461 = vpop.f32.mrf.mxu0
      %v1462 = vadd.f32 %v1342, %v1461
      %1463 = vmatmul.bf16.gmra.mxu0 %v1298
      %v1464 = vpop.f32.mrf.mxu0
      %v1465 = vadd.f32 %v1342, %v1464
      %v1466 = vpop.f32.mrf.mxu0
      %v1467 = vadd.f32 %v1342, %v1466
      %1468 = vmatmul.bf16.gmra.mxu0 %v1300
      %v1469 = vpop.f32.mrf.mxu0
      %v1470 = vadd.f32 %v1342, %v1469
      %v1471 = vpop.f32.mrf.mxu0
      %v1472 = vadd.f32 %v1342, %v1471
      %1473 = vmatmul.bf16.gmra.mxu0 %v1302
      %v1474 = vpop.f32.mrf.mxu0
      %v1475 = vadd.f32 %v1342, %v1474
      %v1476 = vpop.f32.mrf.mxu0
      %v1477 = vadd.f32 %v1342, %v1476
      %1478 = vmatmul.bf16.gmra.mxu0 %v1304
      %v1479 = vpop.f32.mrf.mxu0
      %v1480 = vadd.f32 %v1342, %v1479
      %v1481 = vpop.f32.mrf.mxu0
      %v1482 = vadd.f32 %v1342, %v1481
      %1483 = vmatmul.bf16.gmra.mxu0 %v1306
      %v1484 = vpop.f32.mrf.mxu0
      %v1485 = vadd.f32 %v1342, %v1484
      %v1486 = vpop.f32.mrf.mxu0
      %v1487 = vadd.f32 %v1342, %v1486
      %1488 = vdwg.mxu0
      %1489 = vmatpush.bf16.msra.mxu0 %v1423
      %1490 = vmatpush.bf16.msra.mxu0 %v1422
      %1491 = vmatpush.bf16.msra.mxu0 %v1421
      %1492 = vmatpush.bf16.msra.mxu0 %v1420
      %1493 = vmatpush.bf16.msra.mxu0 %v1419
      %1494 = vmatpush.bf16.msra.mxu0 %v1418
      %1495 = vmatpush.bf16.msra.mxu0 %v1417
      %1496 = vmatpush.bf16.msra.mxu0 %v1416
      %1497 = vmatmul.bf16.gmra.mxu0 %v1293
      %v1498 = vpop.f32.mrf.mxu0
      %v1499 = vadd.f32 %v1450, %v1498
      %v1500 = vpop.f32.mrf.mxu0
      %v1501 = vadd.f32 %v1452, %v1500
      %1502 = vmatmul.bf16.gmra.mxu0 %v1295
      %v1503 = vpop.f32.mrf.mxu0
      %v1504 = vadd.f32 %v1455, %v1503
      %v1505 = vpop.f32.mrf.mxu0
      %v1506 = vadd.f32 %v1457, %v1505
      %1507 = vmatmul.bf16.gmra.mxu0 %v1297
      %v1508 = vpop.f32.mrf.mxu0
      %v1509 = vadd.f32 %v1460, %v1508
      %v1510 = vpop.f32.mrf.mxu0
      %v1511 = vadd.f32 %v1462, %v1510
      %1512 = vmatmul.bf16.gmra.mxu0 %v1299
      %v1513 = vpop.f32.mrf.mxu0
      %v1514 = vadd.f32 %v1465, %v1513
      %v1515 = vpop.f32.mrf.mxu0
      %v1516 = vadd.f32 %v1467, %v1515
      %1517 = vmatmul.bf16.gmra.mxu0 %v1301
      %v1518 = vpop.f32.mrf.mxu0
      %v1519 = vadd.f32 %v1470, %v1518
      %v1520 = vpop.f32.mrf.mxu0
      %v1521 = vadd.f32 %v1472, %v1520
      %1522 = vmatmul.bf16.gmra.mxu0 %v1303
      %v1523 = vpop.f32.mrf.mxu0
      %v1524 = vadd.f32 %v1475, %v1523
      %v1525 = vpop.f32.mrf.mxu0
      %v1526 = vadd.f32 %v1477, %v1525
      %1527 = vmatmul.bf16.gmra.mxu0 %v1305
      %v1528 = vpop.f32.mrf.mxu0
      %v1529 = vadd.f32 %v1480, %v1528
      %v1530 = vpop.f32.mrf.mxu0
      %v1531 = vadd.f32 %v1482, %v1530
      %1532 = vmatmul.bf16.gmra.mxu0 %v1307
      %v1533 = vpop.f32.mrf.mxu0
      %v1534 = vadd.f32 %v1485, %v1533
      %v1535 = vpop.f32.mrf.mxu0
      %v1536 = vadd.f32 %v1487, %v1535
      %1537 = vdwg.mxu0
      %v1538 = vmax.f32 %v1499, 0.0
      %v1539 = vmax.f32 %v1501, 0.0
      %v1540 = vmax.f32 %v1504, 0.0
      %v1541 = vmax.f32 %v1506, 0.0
      %v1542 = vmax.f32 %v1509, 0.0
      %v1543 = vmax.f32 %v1511, 0.0
      %v1544 = vmax.f32 %v1514, 0.0
      %v1545 = vmax.f32 %v1516, 0.0
      %v1546 = vmax.f32 %v1519, 0.0
      %v1547 = vmax.f32 %v1521, 0.0
      %v1548 = vmax.f32 %v1524, 0.0
      %v1549 = vmax.f32 %v1526, 0.0
      %v1550 = vmax.f32 %v1529, 0.0
      %v1551 = vmax.f32 %v1531, 0.0
      %v1552 = vmax.f32 %v1534, 0.0
      %v1553 = vmax.f32 %v1536, 0.0
      %v1554 = vld [vmem:[%s5] sm:$0x1]
      %v1556 = vperm.slane %v1554, 0
      %v1558 = vmul.f32 %v1538, %v1556
      %v1559 = vmul.f32 %v1539, %v1556
      %v1560 = vmul.f32 %v1540, %v1556
      %v1561 = vmul.f32 %v1541, %v1556
      %v1562 = vmul.f32 %v1542, %v1556
      %v1563 = vmul.f32 %v1543, %v1556
      %v1564 = vmul.f32 %v1544, %v1556
      %v1565 = vmul.f32 %v1545, %v1556
      %v1566 = vmul.f32 %v1546, %v1556
      %v1567 = vmul.f32 %v1547, %v1556
      %v1568 = vmul.f32 %v1548, %v1556
      %v1569 = vmul.f32 %v1549, %v1556
      %v1570 = vmul.f32 %v1550, %v1556
      %v1571 = vmul.f32 %v1551, %v1556
      %v1572 = vmul.f32 %v1552, %v1556
      %v1573 = vmul.f32 %v1553, %v1556
      %1574 = vadd.xlane.f32.xlu0 %v1558
      %v1575 = vpop.xlane.xlu0 %1574
      %1576 = vadd.xlane.f32.xlu0 %v1559
      %v1577 = vpop.xlane.xlu0 %1576
      %1578 = vadd.xlane.f32.xlu0 %v1560
      %v1579 = vpop.xlane.xlu0 %1578
      %1580 = vadd.xlane.f32.xlu0 %v1561
      %v1581 = vpop.xlane.xlu0 %1580
      %1582 = vadd.xlane.f32.xlu0 %v1562
      %v1583 = vpop.xlane.xlu0 %1582
      %1584 = vadd.xlane.f32.xlu0 %v1563
      %v1585 = vpop.xlane.xlu0 %1584
      %1586 = vadd.xlane.f32.xlu0 %v1564
      %v1587 = vpop.xlane.xlu0 %1586
      %1588 = vadd.xlane.f32.xlu0 %v1565
      %v1589 = vpop.xlane.xlu0 %1588
      %1590 = vadd.xlane.f32.xlu0 %v1566
      %v1591 = vpop.xlane.xlu0 %1590
      %1592 = vadd.xlane.f32.xlu0 %v1567
      %v1593 = vpop.xlane.xlu0 %1592
      %1594 = vadd.xlane.f32.xlu0 %v1568
      %v1595 = vpop.xlane.xlu0 %1594
      %1596 = vadd.xlane.f32.xlu0 %v1569
      %v1597 = vpop.xlane.xlu0 %1596
      %1598 = vadd.xlane.f32.xlu0 %v1570
      %v1599 = vpop.xlane.xlu0 %1598
      %1600 = vadd.xlane.f32.xlu0 %v1571
      %v1601 = vpop.xlane.xlu0 %1600
      %1602 = vadd.xlane.f32.xlu0 %v1572
      %v1603 = vpop.xlane.xlu0 %1602
      %1604 = vadd.xlane.f32.xlu0 %v1573
      %v1605 = vpop.xlane.xlu0 %1604
      %s1606 = sld [smem:[#allocation2]]
      %v1607 = vstv %s1606
      %v1608 = vadd.f32 %v1575, %v1607
      %v1609 = vadd.f32 %v1577, %v1607
      %v1610 = vadd.f32 %v1579, %v1607
      %v1611 = vadd.f32 %v1581, %v1607
      %v1612 = vadd.f32 %v1583, %v1607
      %v1613 = vadd.f32 %v1585, %v1607
      %v1614 = vadd.f32 %v1587, %v1607
      %v1615 = vadd.f32 %v1589, %v1607
      %v1616 = vadd.f32 %v1591, %v1607
      %v1617 = vadd.f32 %v1593, %v1607
      %v1618 = vadd.f32 %v1595, %v1607
      %v1619 = vadd.f32 %v1597, %v1607
      %v1620 = vadd.f32 %v1599, %v1607
      %v1621 = vadd.f32 %v1601, %v1607
      %v1622 = vadd.f32 %v1603, %v1607
      %v1623 = vadd.f32 %v1605, %v1607
      %vm1624 = vcmask 7168
      %1625 = vst.msk [vmem:[%s284] sm:$0xff] %vm1624, %v1608
      %1626 = vst.msk [vmem:[%s284 + $0x8] sm:$0xff] %vm1624, %v1609
      %1627 = vst.msk [vmem:[%s284 + $0x10] sm:$0xff] %vm1624, %v1610
      %1628 = vst.msk [vmem:[%s284 + $0x18] sm:$0xff] %vm1624, %v1611
      %1629 = vst.msk [vmem:[%s284 + $0x20] sm:$0xff] %vm1624, %v1612
      %1630 = vst.msk [vmem:[%s284 + $0x28] sm:$0xff] %vm1624, %v1613
      %1631 = vst.msk [vmem:[%s284 + $0x30] sm:$0xff] %vm1624, %v1614
      %1632 = vst.msk [vmem:[%s284 + $0x38] sm:$0xff] %vm1624, %v1615
      %1633 = vst.msk [vmem:[%s284 + $0x40] sm:$0xff] %vm1624, %v1616
      %1634 = vst.msk [vmem:[%s284 + $0x48] sm:$0xff] %vm1624, %v1617
      %1635 = vst.msk [vmem:[%s284 + $0x50] sm:$0xff] %vm1624, %v1618
      %1636 = vst.msk [vmem:[%s284 + $0x58] sm:$0xff] %vm1624, %v1619
      %1637 = vst.msk [vmem:[%s284 + $0x60] sm:$0xff] %vm1624, %v1620
      %1638 = vst.msk [vmem:[%s284 + $0x68] sm:$0xff] %vm1624, %v1621
      %1639 = vst.msk [vmem:[%s284 + $0x70] sm:$0xff] %vm1624, %v1622
      %1640 = vst.msk [vmem:[%s284 + $0x78] sm:$0xff] %vm1624, %v1623
      %s1641 = smul.u32 16, %s19
      %p1642 = scmp.lt.s32.totalorder %s1641, 63
      %s1643 = scalar_select %p1642, %s1641, 63
      %s1644 = smul.addr %s1643, 8
      %s1645 = scalar_lea.vmem %s7, %s1644
      // Predicated region
      $region49: #{regressor_forward.1} parent=47 // pred_check
        %p1646 = pneg %p189
      $region50: #{regressor_forward.1} parent=47 // pred_check_branch
        %1648 = sbr.rel (%p1646) target = $region52
      $region51: #{regressor_forward.1} parent=47 // pred_region
        %s1649 = smul.u32 16, %s19
      $region52: #{regressor_forward.1} parent=47 // pred_fallthru
        _
    $region48: #{regressor_forward.1} parent=5 // pred_fallthru
      _
    %p1650 = scmp.le.s32.totalorder 2, %s14
    // Predicated region
    $region53: #{regressor_forward.1} parent=5 // pred_check
      %p1651 = pneg %p1650
    $region54: #{regressor_forward.1} parent=5 // pred_check_branch
      %1653 = sbr.rel (%p1651) target = $region56
    $region55: #{regressor_forward.1} parent=5 // pred_region
      %s1654 = ssub.s32 %s14, 2
      // Predicated region
      $region57: #{regressor_forward.1} parent=55 // pred_check
        %p1655 = pneg %p195
      $region58: #{regressor_forward.1} parent=55 // pred_check_branch
        %1657 = sbr.rel (%p1655) target = $region60
      $region59: #{regressor_forward.1} parent=55 // pred_region
        %s1658 = smul.u32 16, %s20
        %p1659 = scmp.lt.s32.totalorder %s1658, 63
        %s1660 = scalar_select %p1659, %s1658, 63
        %s1661 = smul.addr %s1660, 8
        %s1662 = scalar_lea.vmem %s7, %s1661
      $region60: #{regressor_forward.1} parent=55 // pred_fallthru
        _
    $region56: #{regressor_forward.1} parent=5 // pred_fallthru
      _
  $region6: #{regressor_forward.1} parent=0 // loop_footer
    %s18 = sadd.s32 1, %s14
  $region7: #{regressor_forward.1} parent=0 // loop_footer_branch
    %13 = sbr.rel target = $region3
  $region8: #{regressor_forward.1} parent=0 // loop_exit
    _

</llo_original>
